<compile_context>
chip_gen: v7x
topology: tpu7x:2x2x1
jax: 0.10.0
libtpu: 0.0.40
codegen_flags: <defaults>
</compile_context>

<pallas_src>
import math
import functools
import numpy as np

import jax
import jax.numpy as jnp
from jax.experimental import pallas as pl
from jax.experimental.pallas import tpu as pltpu

LN_EPS = 1e-5  # torch.nn.LayerNorm default


# ---------------------------------------------------------------------------
# in-kernel math helpers (VPU / EUP)
# ---------------------------------------------------------------------------
def _layernorm(x, g, b):
    mean = jnp.mean(x, axis=-1, keepdims=True)
    var = jnp.mean(jnp.square(x - mean), axis=-1, keepdims=True)  # biased, like torch
    return (x - mean) * jax.lax.rsqrt(var + LN_EPS) * g + b


def _gelu_tanh(x):
    # tanh-based GELU: transcendental work goes to the EUP slot; deviation from
    # the exact erf GELU is well inside the bf16 tolerance used below.
    c = math.sqrt(2.0 / math.pi)
    return 0.5 * x * (1.0 + jnp.tanh(c * (x + 0.044715 * (x * x * x))))


# ---------------------------------------------------------------------------
# Pallas kernel: one transformer Block for a block of `bb` full sequences
# ---------------------------------------------------------------------------
def block_kernel(x_ref, ln1g_ref, ln1b_ref, wqkv_ref, wproj_ref, bproj_ref,
                 ln2g_ref, ln2b_ref, wfc1_ref, bfc1_ref, wfc2_ref, bfc2_ref,
                 o_ref, qkv_ref, ctx_ref,
                 *, num_heads, seq_len, mlp_chunk):
    xt = x_ref[...].astype(jnp.float32)          # (T, C), T = bb * seq_len
    t, c = xt.shape
    bb = t // seq_len
    dh = c // num_heads

    # ---- residual branch 1: LayerNorm -> fused QKV -> per-head attn -> proj ----
    h1 = _layernorm(xt, ln1g_ref[...], ln1b_ref[...])
    # ONE lane-dense (T,C)x(C,3C) matmul; qk scale already folded into Q columns.
    qkv_ref[...] = jnp.dot(h1.astype(jnp.bfloat16), wqkv_ref[...],
                           preferred_element_type=jnp.float32).astype(jnp.bfloat16)

    # Per-head attention.  Static loop, but each iteration only touches small
    # scratch-ref slices -- nothing large stays live across the unroll.
    for hd in range(num_heads):
        off = hd * dh
        qh = qkv_ref[:, off:off + dh].reshape(bb, seq_len, dh)              # (bb,N,dh) bf16
        kh = qkv_ref[:, c + off:c + off + dh].reshape(bb, seq_len, dh)
        vh = qkv_ref[:, 2 * c + off:2 * c + off + dh].reshape(bb, seq_len, dh)

        s = jnp.einsum('bnd,bmd->bnm', qh, kh,
                       preferred_element_type=jnp.float32)                  # (bb,N,N)
        s = s - jnp.max(s, axis=-1, keepdims=True)
        p = jnp.exp(s)
        p = p * pl.reciprocal(jnp.sum(p, axis=-1, keepdims=True), approx=True)
        ctxh = jnp.einsum('bnm,bmd->bnd', p.astype(jnp.bfloat16), vh,
                          preferred_element_type=jnp.float32)               # (bb,N,dh)
        # assemble the "concat of heads" layout directly in VMEM
        ctx_ref[:, off:off + dh] = ctxh.reshape(t, dh).astype(jnp.bfloat16)

    # single full-K output projection: (T,C)x(C,C)
    attn = jnp.dot(ctx_ref[...], wproj_ref[...], preferred_element_type=jnp.float32)
    x1 = xt + attn + bproj_ref[...]              # DropPath / dropout = identity

    # ---- residual branch 2: LayerNorm -> MLP (fc1 -> GELU -> fc2), hidden-chunked ----
    h2b = _layernorm(x1, ln2g_ref[...], ln2b_ref[...]).astype(jnp.bfloat16)
    n_hidden = wfc1_ref.shape[1]
    mlp = jnp.zeros((t, c), jnp.float32)
    for c0 in range(0, n_hidden, mlp_chunk):
        cw = min(mlp_chunk, n_hidden - c0)
        f = jnp.dot(h2b, wfc1_ref[:, c0:c0 + cw],
                    preferred_element_type=jnp.float32) + bfc1_ref[:, c0:c0 + cw]
        f = _gelu_tanh(f)
        mlp = mlp + jnp.dot(f.astype(jnp.bfloat16), wfc2_ref[c0:c0 + cw, :],
                            preferred_element_type=jnp.float32)
    o_ref[...] = (x1 + mlp + bfc2_ref[...]).astype(o_ref.dtype)


# ---------------------------------------------------------------------------
# host-side, one-time parameter preparation (hoisted out of the forward pass)
# ---------------------------------------------------------------------------
def prepare_params(params, num_heads):
    C = params["w_qkv_t"].shape[0]
    dh = C // num_heads
    scale = dh ** (-0.5)                          # qk_scale default = head_dim**-0.5
    bf = jnp.bfloat16
    wqkv = jnp.asarray(params["w_qkv_t"])
    wqkv = wqkv.at[:, :C].multiply(scale)         # fold qk scale into the Q columns
    return dict(
        ln1_g=params["ln1_g"], ln1_b=params["ln1_b"],
        w_qkv=wqkv.astype(bf),                    # (C, 3C), columns head-major per q/k/v
        w_proj=jnp.asarray(params["w_proj_t"]).astype(bf),   # (C, C)
        b_proj=params["b_proj"],
        ln2_g=params["ln2_g"], ln2_b=params["ln2_b"],
        w_fc1=jnp.asarray(params["w_fc1_t"]).astype(bf), b_fc1=params["b_fc1"],
        w_fc2=jnp.asarray(params["w_fc2_t"]).astype(bf), b_fc2=params["b_fc2"],
    )


# ---------------------------------------------------------------------------
# wrapper
# ---------------------------------------------------------------------------
def _pick_block_batch(batch, seq_len, channels, hidden,
                      target_rows=512, vmem_budget_bytes=24 * 2**20):
    """Sequences per grid step: sublane-legal rows, activation residency within
    a VMEM budget, >=2 grid steps when possible (both v7x TCs), >=target rows
    to amortize per-step pipeline overhead."""
    mlp_chunk = min(hidden, 512)

    def legal(d):
        return batch % d == 0 and ((d * seq_len) % 8 == 0 or d == batch)

    def act_bytes(d):
        rows = d * seq_len
        f32 = 4 * rows * (4 * channels + 2 * mlp_chunk)      # x/x1/h/mlp + chunk temps
        b16 = 2 * rows * (6 * channels)                      # qkv + ctx scratch + bf16 copies
        dma = 2 * 2 * 4 * rows * channels                    # double-buffered in/out tiles
        return f32 + b16 + dma

    cands = [d for d in range(1, batch + 1) if legal(d)] or [batch]
    fit = [d for d in cands if act_bytes(d) <= vmem_budget_bytes] or cands[:1]
    multi = [d for d in fit if batch // d >= 2] or fit
    for d in multi:
        if d * seq_len >= target_rows:
            return d
    return multi[-1]


@functools.partial(jax.jit, static_argnums=(2,))
def vit_block(x, prep, num_heads):
    B, N, C = x.shape
    assert C % num_heads == 0
    hidden = prep["w_fc1"].shape[1]
    mlp_chunk = min(hidden, 512)

    bb = _pick_block_batch(B, N, C, hidden)       # sequences per grid step
    t_blk = bb * N
    xf = x.reshape(B * N, C)                      # flatten batch x tokens -> row tiles

    params_list = [prep[k] for k in (
        "ln1_g", "ln1_b", "w_qkv", "w_proj", "b_proj",
        "ln2_g", "ln2_b", "w_fc1", "b_fc1", "w_fc2", "b_fc2")]

    in_specs = [pl.BlockSpec((t_blk, C), lambda i: (i, 0))]
    for p in params_list:
        # small weights/params: whole array resident for every grid step
        in_specs.append(pl.BlockSpec(p.shape, lambda i, _r=p.ndim: (0,) * _r))

    kernel = functools.partial(block_kernel, num_heads=num_heads,
                               seq_len=N, mlp_chunk=mlp_chunk)
    out = pl.pallas_call(
        kernel,
        out_shape=jax.ShapeDtypeStruct((B * N, C), x.dtype),
        grid=(B // bb,),
        in_specs=in_specs,
        out_specs=pl.BlockSpec((t_blk, C), lambda i: (i, 0)),
        scratch_shapes=[pltpu.VMEM((t_blk, 3 * C), jnp.bfloat16),   # fused QKV
                        pltpu.VMEM((t_blk, C), jnp.bfloat16)],      # assembled ctx
        input_output_aliases={0: 0},              # reuse xf's HBM buffer for the output
        compiler_params=pltpu.CompilerParams(
            dimension_semantics=("parallel",),
            vmem_limit_bytes=48 * 1024 * 1024,    # < v7x 64 MiB physical, generous on v5e/v6e
        ),
    )(xf, *params_list)
    return out.reshape(B, N, C)


# ---------------------------------------------------------------------------
# pure-JAX reference (mirrors the PyTorch forward, fp32 / exact GELU)
# ---------------------------------------------------------------------------
def block_ref(x, params, num_heads):
    B, N, C = x.shape
    dh = C // num_heads
    scale = dh ** (-0.5)

    def ln(y, g, b):
        m = y.mean(-1, keepdims=True)
        v = ((y - m) ** 2).mean(-1, keepdims=True)
        return (y - m) / jnp.sqrt(v + LN_EPS) * g + b

    h = ln(x, params["ln1_g"][0], params["ln1_b"][0])
    qkv = (h @ params["w_qkv_t"]).reshape(B, N, 3, num_heads, dh).transpose(2, 0, 3, 1, 4)
    q, k, v = qkv[0], qkv[1], qkv[2]
    att = jax.nn.softmax((q @ jnp.swapaxes(k, -2, -1)) * scale, axis=-1)
    o = (att @ v).transpose(0, 2, 1, 3).reshape(B, N, C)
    o = o @ params["w_proj_t"] + params["b_proj"][0]
    x = x + o
    h2 = ln(x, params["ln2_g"][0], params["ln2_b"][0])
    f = jax.nn.gelu(h2 @ params["w_fc1_t"] + params["b_fc1"][0], approximate=False)
    f = f @ params["w_fc2_t"] + params["b_fc2"][0]
    return x + f


if __name__ == "__main__":
    # Small shapes consistent with the module: B=2, N=8 tokens, dim=32,
    # num_heads=8 (head_dim=4), mlp_ratio=4 -> hidden=128.
    B, N, DIM, HEADS, MLP_RATIO = 2, 8, 32, 8, 4
    HIDDEN = DIM * MLP_RATIO

    key = jax.random.PRNGKey(0)
    keys = jax.random.split(key, 12)

    params = {
        # LayerNorm affine params (torch default ones/zeros; perturbed so the test is non-trivial)
        "ln1_g": 1.0 + 0.1 * jax.random.normal(keys[0], (1, DIM), jnp.float32),
        "ln1_b": 0.1 * jax.random.normal(keys[1], (1, DIM), jnp.float32),
        "ln2_g": 1.0 + 0.1 * jax.random.normal(keys[2], (1, DIM), jnp.float32),
        "ln2_b": 0.1 * jax.random.normal(keys[3], (1, DIM), jnp.float32),
        # Linear weights stored pre-transposed (in_features, out_features):
        # y = x @ W_t + b  (== torch's x @ W.T + b).
        "w_qkv_t": 0.02 * jax.random.normal(keys[4], (DIM, 3 * DIM), jnp.float32),  # qkv_bias=False
        "w_proj_t": 0.02 * jax.random.normal(keys[5], (DIM, DIM), jnp.float32),
        "b_proj": 0.02 * jax.random.normal(keys[6], (1, DIM), jnp.float32),
        "w_fc1_t": 0.02 * jax.random.normal(keys[7], (DIM, HIDDEN), jnp.float32),
        "b_fc1": 0.02 * jax.random.normal(keys[8], (1, HIDDEN), jnp.float32),
        "w_fc2_t": 0.02 * jax.random.normal(keys[9], (HIDDEN, DIM), jnp.float32),
        "b_fc2": 0.02 * jax.random.normal(keys[10], (1, DIM), jnp.float32),
    }

    x = jax.random.normal(keys[11], (B, N, DIM), jnp.float32)

    prep = prepare_params(params, HEADS)          # one-time host-side weight prep
    out = jax.block_until_ready(vit_block(x, prep, HEADS))
    ref = jax.block_until_ready(block_ref(x, params, HEADS))

    # bf16 MXU operands + tanh-GELU + approx reciprocal => looser tolerance than pure fp32
    np.testing.assert_allclose(np.asarray(out), np.asarray(ref), rtol=2e-2, atol=3e-3)

    print("KERNEL_OK")
</pallas_src>

<mosaic_0001>
module attributes {stable_mosaic.version = 11 : i64} {
  func.func @block_kernel(%arg0: i32, %arg1: memref<8x32xf32, #tpu.memory_space<vmem>>, %arg2: memref<1x32xf32, #tpu.memory_space<vmem>>, %arg3: memref<1x32xf32, #tpu.memory_space<vmem>>, %arg4: memref<32x96xbf16, #tpu.memory_space<vmem>>, %arg5: memref<32x32xbf16, #tpu.memory_space<vmem>>, %arg6: memref<1x32xf32, #tpu.memory_space<vmem>>, %arg7: memref<1x32xf32, #tpu.memory_space<vmem>>, %arg8: memref<1x32xf32, #tpu.memory_space<vmem>>, %arg9: memref<32x128xbf16, #tpu.memory_space<vmem>>, %arg10: memref<1x128xf32, #tpu.memory_space<vmem>>, %arg11: memref<128x32xbf16, #tpu.memory_space<vmem>>, %arg12: memref<1x32xf32, #tpu.memory_space<vmem>>, %arg13: memref<8x32xf32, #tpu.memory_space<vmem>>, %arg14: memref<8x96xbf16, #tpu.memory_space<vmem>>, %arg15: memref<8x32xbf16, #tpu.memory_space<vmem>>) attributes {dimension_semantics = [#tpu.dimension_semantics<parallel>], iteration_bounds = array<i64: 2>, scalar_prefetch = 0 : i64, scratch_operands = 2 : i64, tpu.core_type = #tpu.core_type<tc>, window_params = [{transform_indices = @transform_0, window_bounds = array<i64: 8, 32>}, {pipeline_mode = #tpu.pipeline_mode<synchronous>, transform_indices = @transform_1, window_bounds = array<i64: 1, 32>}, {pipeline_mode = #tpu.pipeline_mode<synchronous>, transform_indices = @transform_2, window_bounds = array<i64: 1, 32>}, {pipeline_mode = #tpu.pipeline_mode<synchronous>, transform_indices = @transform_3, window_bounds = array<i64: 32, 96>}, {pipeline_mode = #tpu.pipeline_mode<synchronous>, transform_indices = @transform_4, window_bounds = array<i64: 32, 32>}, {pipeline_mode = #tpu.pipeline_mode<synchronous>, transform_indices = @transform_5, window_bounds = array<i64: 1, 32>}, {pipeline_mode = #tpu.pipeline_mode<synchronous>, transform_indices = @transform_6, window_bounds = array<i64: 1, 32>}, {pipeline_mode = #tpu.pipeline_mode<synchronous>, transform_indices = @transform_7, window_bounds = array<i64: 1, 32>}, {pipeline_mode = #tpu.pipeline_mode<synchronous>, transform_indices = @transform_8, window_bounds = array<i64: 32, 128>}, {pipeline_mode = #tpu.pipeline_mode<synchronous>, transform_indices = @transform_9, window_bounds = array<i64: 1, 128>}, {pipeline_mode = #tpu.pipeline_mode<synchronous>, transform_indices = @transform_10, window_bounds = array<i64: 128, 32>}, {pipeline_mode = #tpu.pipeline_mode<synchronous>, transform_indices = @transform_11, window_bounds = array<i64: 1, 32>}, {transform_indices = @transform_12, window_bounds = array<i64: 8, 32>}]} {
    %c0 = arith.constant 0 : index
    %c0_0 = arith.constant 0 : index
    %0 = vector.load %arg1[%c0, %c0_0] : memref<8x32xf32, #tpu.memory_space<vmem>>, vector<8x32xf32>
    %c0_1 = arith.constant 0 : index
    %c0_2 = arith.constant 0 : index
    %1 = vector.load %arg2[%c0_1, %c0_2] : memref<1x32xf32, #tpu.memory_space<vmem>>, vector<1x32xf32>
    %c0_3 = arith.constant 0 : index
    %c0_4 = arith.constant 0 : index
    %2 = vector.load %arg3[%c0_3, %c0_4] : memref<1x32xf32, #tpu.memory_space<vmem>>, vector<1x32xf32>
    %cst = arith.constant dense<0.000000e+00> : vector<8xf32>
    %3 = vector.multi_reduction <add>, %0, %cst [1] : vector<8x32xf32> to vector<8xf32>
    %4 = vector.shape_cast %3 : vector<8xf32> to vector<8x1xf32>
    %cst_5 = arith.constant 3.200000e+01 : f32
    %5 = vector.broadcast %cst_5 : f32 to vector<8x1xf32>
    %6 = arith.divf %4, %5 : vector<8x1xf32>
    %7 = vector.broadcast %6 : vector<8x1xf32> to vector<8x32xf32>
    %8 = arith.subf %0, %7 : vector<8x32xf32>
    %9 = arith.mulf %8, %8 : vector<8x32xf32>
    %cst_6 = arith.constant dense<0.000000e+00> : vector<8xf32>
    %10 = vector.multi_reduction <add>, %9, %cst_6 [1] : vector<8x32xf32> to vector<8xf32>
    %11 = vector.shape_cast %10 : vector<8xf32> to vector<8x1xf32>
    %cst_7 = arith.constant 3.200000e+01 : f32
    %12 = vector.broadcast %cst_7 : f32 to vector<8x1xf32>
    %13 = arith.divf %11, %12 : vector<8x1xf32>
    %14 = vector.broadcast %6 : vector<8x1xf32> to vector<8x32xf32>
    %15 = arith.subf %0, %14 : vector<8x32xf32>
    %cst_8 = arith.constant 9.99999974E-6 : f32
    %16 = vector.broadcast %cst_8 : f32 to vector<8x1xf32>
    %17 = arith.addf %13, %16 : vector<8x1xf32>
    %18 = math.rsqrt %17 : vector<8x1xf32>
    %19 = vector.broadcast %18 : vector<8x1xf32> to vector<8x32xf32>
    %20 = arith.mulf %15, %19 : vector<8x32xf32>
    %21 = vector.broadcast %1 : vector<1x32xf32> to vector<8x32xf32>
    %22 = arith.mulf %20, %21 : vector<8x32xf32>
    %23 = vector.broadcast %2 : vector<1x32xf32> to vector<8x32xf32>
    %24 = arith.addf %22, %23 : vector<8x32xf32>
    %25 = arith.truncf %24 : vector<8x32xf32> to vector<8x32xbf16>
    %c0_9 = arith.constant 0 : index
    %c0_10 = arith.constant 0 : index
    %26 = vector.load %arg4[%c0_9, %c0_10] : memref<32x96xbf16, #tpu.memory_space<vmem>>, vector<32x96xbf16>
    %cst_11 = arith.constant dense<0.000000e+00> : vector<8x96xf32>
    %27 = tpu.matmul %25, %26, %cst_11 {dimension_numbers = #tpu.dot_dimension_numbers<[1], [0], [0], [1], [0, 0, 1, 1], [], []>} : vector<8x32xbf16>, vector<32x96xbf16>, vector<8x96xf32> -> vector<8x96xf32>
    %28 = arith.truncf %27 : vector<8x96xf32> to vector<8x96xbf16>
    %c0_12 = arith.constant 0 : index
    %c0_13 = arith.constant 0 : index
    %29 = vector.load %arg14[%c0_12, %c0_13] : memref<8x96xbf16, #tpu.memory_space<vmem>>, vector<8x96xbf16>
    tpu.vector_store %arg14[%c0_12, %c0_13], %28 {strides = array<i32>} : memref<8x96xbf16, #tpu.memory_space<vmem>>, vector<8x96xbf16>,
    %c0_14 = arith.constant 0 : index
    %c0_15 = arith.constant 0 : index
    %30 = vector.load %arg14[%c0_14, %c0_15] : memref<8x96xbf16, #tpu.memory_space<vmem>>, vector<8x4xbf16>
    %31 = vector.shape_cast %30 : vector<8x4xbf16> to vector<1x8x4xbf16>
    %c0_16 = arith.constant 0 : index
    %c32 = arith.constant 32 : index
    %32 = vector.load %arg14[%c0_16, %c32] : memref<8x96xbf16, #tpu.memory_space<vmem>>, vector<8x4xbf16>
    %33 = vector.shape_cast %32 : vector<8x4xbf16> to vector<1x8x4xbf16>
    %c0_17 = arith.constant 0 : index
    %c64 = arith.constant 64 : index
    %34 = vector.load %arg14[%c0_17, %c64] : memref<8x96xbf16, #tpu.memory_space<vmem>>, vector<8x4xbf16>
    %35 = vector.shape_cast %34 : vector<8x4xbf16> to vector<1x8x4xbf16>
    "tpu.trace_start"() <{level = 10 : i32, message = "bnd,bmd->bnm"}> : () -> ()
    %cst_18 = arith.constant dense<0.000000e+00> : vector<1x8x8xf32>
    %36 = tpu.matmul %31, %33, %cst_18 {dimension_numbers = #tpu.dot_dimension_numbers<[2], [2], [1], [1], [0, 0, 0, 1, 1, 1], [0], [0]>} : vector<1x8x4xbf16>, vector<1x8x4xbf16>, vector<1x8x8xf32> -> vector<1x8x8xf32>
    "tpu.trace_stop"() : () -> ()
    %cst_19 = arith.constant dense<0xFF800000> : vector<1x8xf32>
    %37 = vector.multi_reduction <maximumf>, %36, %cst_19 [2] : vector<1x8x8xf32> to vector<1x8xf32>
    %38 = vector.shape_cast %37 : vector<1x8xf32> to vector<1x8x1xf32>
    %39 = vector.broadcast %38 : vector<1x8x1xf32> to vector<1x8x8xf32>
    %40 = arith.subf %36, %39 : vector<1x8x8xf32>
    %41 = math.exp %40 : vector<1x8x8xf32>
    %cst_20 = arith.constant dense<0.000000e+00> : vector<1x8xf32>
    %42 = vector.multi_reduction <add>, %41, %cst_20 [2] : vector<1x8x8xf32> to vector<1x8xf32>
    %43 = vector.shape_cast %42 : vector<1x8xf32> to vector<1x8x1xf32>
    %44 = tpu.reciprocal %43 {approx = true} : vector<1x8x1xf32> -> vector<1x8x1xf32>
    %45 = vector.broadcast %44 : vector<1x8x1xf32> to vector<1x8x8xf32>
    %46 = arith.mulf %41, %45 : vector<1x8x8xf32>
    %47 = arith.truncf %46 : vector<1x8x8xf32> to vector<1x8x8xbf16>
    "tpu.trace_start"() <{level = 10 : i32, message = "bnm,bmd->bnd"}> : () -> ()
    %cst_21 = arith.constant dense<0.000000e+00> : vector<1x8x4xf32>
    %48 = tpu.matmul %47, %35, %cst_21 {dimension_numbers = #tpu.dot_dimension_numbers<[2], [1], [1], [2], [0, 0, 0, 1, 1, 2], [0], [0]>} : vector<1x8x8xbf16>, vector<1x8x4xbf16>, vector<1x8x4xf32> -> vector<1x8x4xf32>
    "tpu.trace_stop"() : () -> ()
    %49 = vector.shape_cast %48 : vector<1x8x4xf32> to vector<8x4xf32>
    %50 = arith.truncf %49 : vector<8x4xf32> to vector<8x4xbf16>
    %c0_22 = arith.constant 0 : index
    %c0_23 = arith.constant 0 : index
    %51 = vector.load %arg15[%c0_22, %c0_23] : memref<8x32xbf16, #tpu.memory_space<vmem>>, vector<8x4xbf16>
    tpu.vector_store %arg15[%c0_22, %c0_23], %50 {strides = array<i32>} : memref<8x32xbf16, #tpu.memory_space<vmem>>, vector<8x4xbf16>,
    %c0_24 = arith.constant 0 : index
    %c4 = arith.constant 4 : index
    %52 = vector.load %arg14[%c0_24, %c4] : memref<8x96xbf16, #tpu.memory_space<vmem>>, vector<8x4xbf16>
    %53 = vector.shape_cast %52 : vector<8x4xbf16> to vector<1x8x4xbf16>
    %c0_25 = arith.constant 0 : index
    %c36 = arith.constant 36 : index
    %54 = vector.load %arg14[%c0_25, %c36] : memref<8x96xbf16, #tpu.memory_space<vmem>>, vector<8x4xbf16>
    %55 = vector.shape_cast %54 : vector<8x4xbf16> to vector<1x8x4xbf16>
    %c0_26 = arith.constant 0 : index
    %c68 = arith.constant 68 : index
    %56 = vector.load %arg14[%c0_26, %c68] : memref<8x96xbf16, #tpu.memory_space<vmem>>, vector<8x4xbf16>
    %57 = vector.shape_cast %56 : vector<8x4xbf16> to vector<1x8x4xbf16>
    "tpu.trace_start"() <{level = 10 : i32, message = "bnd,bmd->bnm"}> : () -> ()
    %cst_27 = arith.constant dense<0.000000e+00> : vector<1x8x8xf32>
    %58 = tpu.matmul %53, %55, %cst_27 {dimension_numbers = #tpu.dot_dimension_numbers<[2], [2], [1], [1], [0, 0, 0, 1, 1, 1], [0], [0]>} : vector<1x8x4xbf16>, vector<1x8x4xbf16>, vector<1x8x8xf32> -> vector<1x8x8xf32>
    "tpu.trace_stop"() : () -> ()
    %cst_28 = arith.constant dense<0xFF800000> : vector<1x8xf32>
    %59 = vector.multi_reduction <maximumf>, %58, %cst_28 [2] : vector<1x8x8xf32> to vector<1x8xf32>
    %60 = vector.shape_cast %59 : vector<1x8xf32> to vector<1x8x1xf32>
    %61 = vector.broadcast %60 : vector<1x8x1xf32> to vector<1x8x8xf32>
    %62 = arith.subf %58, %61 : vector<1x8x8xf32>
    %63 = math.exp %62 : vector<1x8x8xf32>
    %cst_29 = arith.constant dense<0.000000e+00> : vector<1x8xf32>
    %64 = vector.multi_reduction <add>, %63, %cst_29 [2] : vector<1x8x8xf32> to vector<1x8xf32>
    %65 = vector.shape_cast %64 : vector<1x8xf32> to vector<1x8x1xf32>
    %66 = tpu.reciprocal %65 {approx = true} : vector<1x8x1xf32> -> vector<1x8x1xf32>
    %67 = vector.broadcast %66 : vector<1x8x1xf32> to vector<1x8x8xf32>
    %68 = arith.mulf %63, %67 : vector<1x8x8xf32>
    %69 = arith.truncf %68 : vector<1x8x8xf32> to vector<1x8x8xbf16>
    "tpu.trace_start"() <{level = 10 : i32, message = "bnm,bmd->bnd"}> : () -> ()
    %cst_30 = arith.constant dense<0.000000e+00> : vector<1x8x4xf32>
    %70 = tpu.matmul %69, %57, %cst_30 {dimension_numbers = #tpu.dot_dimension_numbers<[2], [1], [1], [2], [0, 0, 0, 1, 1, 2], [0], [0]>} : vector<1x8x8xbf16>, vector<1x8x4xbf16>, vector<1x8x4xf32> -> vector<1x8x4xf32>
    "tpu.trace_stop"() : () -> ()
    %71 = vector.shape_cast %70 : vector<1x8x4xf32> to vector<8x4xf32>
    %72 = arith.truncf %71 : vector<8x4xf32> to vector<8x4xbf16>
    %c0_31 = arith.constant 0 : index
    %c4_32 = arith.constant 4 : index
    %73 = vector.load %arg15[%c0_31, %c4_32] : memref<8x32xbf16, #tpu.memory_space<vmem>>, vector<8x4xbf16>
    tpu.vector_store %arg15[%c0_31, %c4_32], %72 {strides = array<i32>} : memref<8x32xbf16, #tpu.memory_space<vmem>>, vector<8x4xbf16>,
    %c0_33 = arith.constant 0 : index
    %c8 = arith.constant 8 : index
    %74 = vector.load %arg14[%c0_33, %c8] : memref<8x96xbf16, #tpu.memory_space<vmem>>, vector<8x4xbf16>
    %75 = vector.shape_cast %74 : vector<8x4xbf16> to vector<1x8x4xbf16>
    %c0_34 = arith.constant 0 : index
    %c40 = arith.constant 40 : index
    %76 = vector.load %arg14[%c0_34, %c40] : memref<8x96xbf16, #tpu.memory_space<vmem>>, vector<8x4xbf16>
    %77 = vector.shape_cast %76 : vector<8x4xbf16> to vector<1x8x4xbf16>
    %c0_35 = arith.constant 0 : index
    %c72 = arith.constant 72 : index
    %78 = vector.load %arg14[%c0_35, %c72] : memref<8x96xbf16, #tpu.memory_space<vmem>>, vector<8x4xbf16>
    %79 = vector.shape_cast %78 : vector<8x4xbf16> to vector<1x8x4xbf16>
    "tpu.trace_start"() <{level = 10 : i32, message = "bnd,bmd->bnm"}> : () -> ()
    %cst_36 = arith.constant dense<0.000000e+00> : vector<1x8x8xf32>
    %80 = tpu.matmul %75, %77, %cst_36 {dimension_numbers = #tpu.dot_dimension_numbers<[2], [2], [1], [1], [0, 0, 0, 1, 1, 1], [0], [0]>} : vector<1x8x4xbf16>, vector<1x8x4xbf16>, vector<1x8x8xf32> -> vector<1x8x8xf32>
    "tpu.trace_stop"() : () -> ()
    %cst_37 = arith.constant dense<0xFF800000> : vector<1x8xf32>
    %81 = vector.multi_reduction <maximumf>, %80, %cst_37 [2] : vector<1x8x8xf32> to vector<1x8xf32>
    %82 = vector.shape_cast %81 : vector<1x8xf32> to vector<1x8x1xf32>
    %83 = vector.broadcast %82 : vector<1x8x1xf32> to vector<1x8x8xf32>
    %84 = arith.subf %80, %83 : vector<1x8x8xf32>
    %85 = math.exp %84 : vector<1x8x8xf32>
    %cst_38 = arith.constant dense<0.000000e+00> : vector<1x8xf32>
    %86 = vector.multi_reduction <add>, %85, %cst_38 [2] : vector<1x8x8xf32> to vector<1x8xf32>
    %87 = vector.shape_cast %86 : vector<1x8xf32> to vector<1x8x1xf32>
    %88 = tpu.reciprocal %87 {approx = true} : vector<1x8x1xf32> -> vector<1x8x1xf32>
    %89 = vector.broadcast %88 : vector<1x8x1xf32> to vector<1x8x8xf32>
    %90 = arith.mulf %85, %89 : vector<1x8x8xf32>
    %91 = arith.truncf %90 : vector<1x8x8xf32> to vector<1x8x8xbf16>
    "tpu.trace_start"() <{level = 10 : i32, message = "bnm,bmd->bnd"}> : () -> ()
    %cst_39 = arith.constant dense<0.000000e+00> : vector<1x8x4xf32>
    %92 = tpu.matmul %91, %79, %cst_39 {dimension_numbers = #tpu.dot_dimension_numbers<[2], [1], [1], [2], [0, 0, 0, 1, 1, 2], [0], [0]>} : vector<1x8x8xbf16>, vector<1x8x4xbf16>, vector<1x8x4xf32> -> vector<1x8x4xf32>
    "tpu.trace_stop"() : () -> ()
    %93 = vector.shape_cast %92 : vector<1x8x4xf32> to vector<8x4xf32>
    %94 = arith.truncf %93 : vector<8x4xf32> to vector<8x4xbf16>
    %c0_40 = arith.constant 0 : index
    %c8_41 = arith.constant 8 : index
    %95 = vector.load %arg15[%c0_40, %c8_41] : memref<8x32xbf16, #tpu.memory_space<vmem>>, vector<8x4xbf16>
    tpu.vector_store %arg15[%c0_40, %c8_41], %94 {strides = array<i32>} : memref<8x32xbf16, #tpu.memory_space<vmem>>, vector<8x4xbf16>,
    %c0_42 = arith.constant 0 : index
    %c12 = arith.constant 12 : index
    %96 = vector.load %arg14[%c0_42, %c12] : memref<8x96xbf16, #tpu.memory_space<vmem>>, vector<8x4xbf16>
    %97 = vector.shape_cast %96 : vector<8x4xbf16> to vector<1x8x4xbf16>
    %c0_43 = arith.constant 0 : index
    %c44 = arith.constant 44 : index
    %98 = vector.load %arg14[%c0_43, %c44] : memref<8x96xbf16, #tpu.memory_space<vmem>>, vector<8x4xbf16>
    %99 = vector.shape_cast %98 : vector<8x4xbf16> to vector<1x8x4xbf16>
    %c0_44 = arith.constant 0 : index
    %c76 = arith.constant 76 : index
    %100 = vector.load %arg14[%c0_44, %c76] : memref<8x96xbf16, #tpu.memory_space<vmem>>, vector<8x4xbf16>
    %101 = vector.shape_cast %100 : vector<8x4xbf16> to vector<1x8x4xbf16>
    "tpu.trace_start"() <{level = 10 : i32, message = "bnd,bmd->bnm"}> : () -> ()
    %cst_45 = arith.constant dense<0.000000e+00> : vector<1x8x8xf32>
    %102 = tpu.matmul %97, %99, %cst_45 {dimension_numbers = #tpu.dot_dimension_numbers<[2], [2], [1], [1], [0, 0, 0, 1, 1, 1], [0], [0]>} : vector<1x8x4xbf16>, vector<1x8x4xbf16>, vector<1x8x8xf32> -> vector<1x8x8xf32>
    "tpu.trace_stop"() : () -> ()
    %cst_46 = arith.constant dense<0xFF800000> : vector<1x8xf32>
    %103 = vector.multi_reduction <maximumf>, %102, %cst_46 [2] : vector<1x8x8xf32> to vector<1x8xf32>
    %104 = vector.shape_cast %103 : vector<1x8xf32> to vector<1x8x1xf32>
    %105 = vector.broadcast %104 : vector<1x8x1xf32> to vector<1x8x8xf32>
    %106 = arith.subf %102, %105 : vector<1x8x8xf32>
    %107 = math.exp %106 : vector<1x8x8xf32>
    %cst_47 = arith.constant dense<0.000000e+00> : vector<1x8xf32>
    %108 = vector.multi_reduction <add>, %107, %cst_47 [2] : vector<1x8x8xf32> to vector<1x8xf32>
    %109 = vector.shape_cast %108 : vector<1x8xf32> to vector<1x8x1xf32>
    %110 = tpu.reciprocal %109 {approx = true} : vector<1x8x1xf32> -> vector<1x8x1xf32>
    %111 = vector.broadcast %110 : vector<1x8x1xf32> to vector<1x8x8xf32>
    %112 = arith.mulf %107, %111 : vector<1x8x8xf32>
    %113 = arith.truncf %112 : vector<1x8x8xf32> to vector<1x8x8xbf16>
    "tpu.trace_start"() <{level = 10 : i32, message = "bnm,bmd->bnd"}> : () -> ()
    %cst_48 = arith.constant dense<0.000000e+00> : vector<1x8x4xf32>
    %114 = tpu.matmul %113, %101, %cst_48 {dimension_numbers = #tpu.dot_dimension_numbers<[2], [1], [1], [2], [0, 0, 0, 1, 1, 2], [0], [0]>} : vector<1x8x8xbf16>, vector<1x8x4xbf16>, vector<1x8x4xf32> -> vector<1x8x4xf32>
    "tpu.trace_stop"() : () -> ()
    %115 = vector.shape_cast %114 : vector<1x8x4xf32> to vector<8x4xf32>
    %116 = arith.truncf %115 : vector<8x4xf32> to vector<8x4xbf16>
    %c0_49 = arith.constant 0 : index
    %c12_50 = arith.constant 12 : index
    %117 = vector.load %arg15[%c0_49, %c12_50] : memref<8x32xbf16, #tpu.memory_space<vmem>>, vector<8x4xbf16>
    tpu.vector_store %arg15[%c0_49, %c12_50], %116 {strides = array<i32>} : memref<8x32xbf16, #tpu.memory_space<vmem>>, vector<8x4xbf16>,
    %c0_51 = arith.constant 0 : index
    %c16 = arith.constant 16 : index
    %118 = vector.load %arg14[%c0_51, %c16] : memref<8x96xbf16, #tpu.memory_space<vmem>>, vector<8x4xbf16>
    %119 = vector.shape_cast %118 : vector<8x4xbf16> to vector<1x8x4xbf16>
    %c0_52 = arith.constant 0 : index
    %c48 = arith.constant 48 : index
    %120 = vector.load %arg14[%c0_52, %c48] : memref<8x96xbf16, #tpu.memory_space<vmem>>, vector<8x4xbf16>
    %121 = vector.shape_cast %120 : vector<8x4xbf16> to vector<1x8x4xbf16>
    %c0_53 = arith.constant 0 : index
    %c80 = arith.constant 80 : index
    %122 = vector.load %arg14[%c0_53, %c80] : memref<8x96xbf16, #tpu.memory_space<vmem>>, vector<8x4xbf16>
    %123 = vector.shape_cast %122 : vector<8x4xbf16> to vector<1x8x4xbf16>
    "tpu.trace_start"() <{level = 10 : i32, message = "bnd,bmd->bnm"}> : () -> ()
    %cst_54 = arith.constant dense<0.000000e+00> : vector<1x8x8xf32>
    %124 = tpu.matmul %119, %121, %cst_54 {dimension_numbers = #tpu.dot_dimension_numbers<[2], [2], [1], [1], [0, 0, 0, 1, 1, 1], [0], [0]>} : vector<1x8x4xbf16>, vector<1x8x4xbf16>, vector<1x8x8xf32> -> vector<1x8x8xf32>
    "tpu.trace_stop"() : () -> ()
    %cst_55 = arith.constant dense<0xFF800000> : vector<1x8xf32>
    %125 = vector.multi_reduction <maximumf>, %124, %cst_55 [2] : vector<1x8x8xf32> to vector<1x8xf32>
    %126 = vector.shape_cast %125 : vector<1x8xf32> to vector<1x8x1xf32>
    %127 = vector.broadcast %126 : vector<1x8x1xf32> to vector<1x8x8xf32>
    %128 = arith.subf %124, %127 : vector<1x8x8xf32>
    %129 = math.exp %128 : vector<1x8x8xf32>
    %cst_56 = arith.constant dense<0.000000e+00> : vector<1x8xf32>
    %130 = vector.multi_reduction <add>, %129, %cst_56 [2] : vector<1x8x8xf32> to vector<1x8xf32>
    %131 = vector.shape_cast %130 : vector<1x8xf32> to vector<1x8x1xf32>
    %132 = tpu.reciprocal %131 {approx = true} : vector<1x8x1xf32> -> vector<1x8x1xf32>
    %133 = vector.broadcast %132 : vector<1x8x1xf32> to vector<1x8x8xf32>
    %134 = arith.mulf %129, %133 : vector<1x8x8xf32>
    %135 = arith.truncf %134 : vector<1x8x8xf32> to vector<1x8x8xbf16>
    "tpu.trace_start"() <{level = 10 : i32, message = "bnm,bmd->bnd"}> : () -> ()
    %cst_57 = arith.constant dense<0.000000e+00> : vector<1x8x4xf32>
    %136 = tpu.matmul %135, %123, %cst_57 {dimension_numbers = #tpu.dot_dimension_numbers<[2], [1], [1], [2], [0, 0, 0, 1, 1, 2], [0], [0]>} : vector<1x8x8xbf16>, vector<1x8x4xbf16>, vector<1x8x4xf32> -> vector<1x8x4xf32>
    "tpu.trace_stop"() : () -> ()
    %137 = vector.shape_cast %136 : vector<1x8x4xf32> to vector<8x4xf32>
    %138 = arith.truncf %137 : vector<8x4xf32> to vector<8x4xbf16>
    %c0_58 = arith.constant 0 : index
    %c16_59 = arith.constant 16 : index
    %139 = vector.load %arg15[%c0_58, %c16_59] : memref<8x32xbf16, #tpu.memory_space<vmem>>, vector<8x4xbf16>
    tpu.vector_store %arg15[%c0_58, %c16_59], %138 {strides = array<i32>} : memref<8x32xbf16, #tpu.memory_space<vmem>>, vector<8x4xbf16>,
    %c0_60 = arith.constant 0 : index
    %c20 = arith.constant 20 : index
    %140 = vector.load %arg14[%c0_60, %c20] : memref<8x96xbf16, #tpu.memory_space<vmem>>, vector<8x4xbf16>
    %141 = vector.shape_cast %140 : vector<8x4xbf16> to vector<1x8x4xbf16>
    %c0_61 = arith.constant 0 : index
    %c52 = arith.constant 52 : index
    %142 = vector.load %arg14[%c0_61, %c52] : memref<8x96xbf16, #tpu.memory_space<vmem>>, vector<8x4xbf16>
    %143 = vector.shape_cast %142 : vector<8x4xbf16> to vector<1x8x4xbf16>
    %c0_62 = arith.constant 0 : index
    %c84 = arith.constant 84 : index
    %144 = vector.load %arg14[%c0_62, %c84] : memref<8x96xbf16, #tpu.memory_space<vmem>>, vector<8x4xbf16>
    %145 = vector.shape_cast %144 : vector<8x4xbf16> to vector<1x8x4xbf16>
    "tpu.trace_start"() <{level = 10 : i32, message = "bnd,bmd->bnm"}> : () -> ()
    %cst_63 = arith.constant dense<0.000000e+00> : vector<1x8x8xf32>
    %146 = tpu.matmul %141, %143, %cst_63 {dimension_numbers = #tpu.dot_dimension_numbers<[2], [2], [1], [1], [0, 0, 0, 1, 1, 1], [0], [0]>} : vector<1x8x4xbf16>, vector<1x8x4xbf16>, vector<1x8x8xf32> -> vector<1x8x8xf32>
    "tpu.trace_stop"() : () -> ()
    %cst_64 = arith.constant dense<0xFF800000> : vector<1x8xf32>
    %147 = vector.multi_reduction <maximumf>, %146, %cst_64 [2] : vector<1x8x8xf32> to vector<1x8xf32>
    %148 = vector.shape_cast %147 : vector<1x8xf32> to vector<1x8x1xf32>
    %149 = vector.broadcast %148 : vector<1x8x1xf32> to vector<1x8x8xf32>
    %150 = arith.subf %146, %149 : vector<1x8x8xf32>
    %151 = math.exp %150 : vector<1x8x8xf32>
    %cst_65 = arith.constant dense<0.000000e+00> : vector<1x8xf32>
    %152 = vector.multi_reduction <add>, %151, %cst_65 [2] : vector<1x8x8xf32> to vector<1x8xf32>
    %153 = vector.shape_cast %152 : vector<1x8xf32> to vector<1x8x1xf32>
    %154 = tpu.reciprocal %153 {approx = true} : vector<1x8x1xf32> -> vector<1x8x1xf32>
    %155 = vector.broadcast %154 : vector<1x8x1xf32> to vector<1x8x8xf32>
    %156 = arith.mulf %151, %155 : vector<1x8x8xf32>
    %157 = arith.truncf %156 : vector<1x8x8xf32> to vector<1x8x8xbf16>
    "tpu.trace_start"() <{level = 10 : i32, message = "bnm,bmd->bnd"}> : () -> ()
    %cst_66 = arith.constant dense<0.000000e+00> : vector<1x8x4xf32>
    %158 = tpu.matmul %157, %145, %cst_66 {dimension_numbers = #tpu.dot_dimension_numbers<[2], [1], [1], [2], [0, 0, 0, 1, 1, 2], [0], [0]>} : vector<1x8x8xbf16>, vector<1x8x4xbf16>, vector<1x8x4xf32> -> vector<1x8x4xf32>
    "tpu.trace_stop"() : () -> ()
    %159 = vector.shape_cast %158 : vector<1x8x4xf32> to vector<8x4xf32>
    %160 = arith.truncf %159 : vector<8x4xf32> to vector<8x4xbf16>
    %c0_67 = arith.constant 0 : index
    %c20_68 = arith.constant 20 : index
    %161 = vector.load %arg15[%c0_67, %c20_68] : memref<8x32xbf16, #tpu.memory_space<vmem>>, vector<8x4xbf16>
    tpu.vector_store %arg15[%c0_67, %c20_68], %160 {strides = array<i32>} : memref<8x32xbf16, #tpu.memory_space<vmem>>, vector<8x4xbf16>,
    %c0_69 = arith.constant 0 : index
    %c24 = arith.constant 24 : index
    %162 = vector.load %arg14[%c0_69, %c24] : memref<8x96xbf16, #tpu.memory_space<vmem>>, vector<8x4xbf16>
    %163 = vector.shape_cast %162 : vector<8x4xbf16> to vector<1x8x4xbf16>
    %c0_70 = arith.constant 0 : index
    %c56 = arith.constant 56 : index
    %164 = vector.load %arg14[%c0_70, %c56] : memref<8x96xbf16, #tpu.memory_space<vmem>>, vector<8x4xbf16>
    %165 = vector.shape_cast %164 : vector<8x4xbf16> to vector<1x8x4xbf16>
    %c0_71 = arith.constant 0 : index
    %c88 = arith.constant 88 : index
    %166 = vector.load %arg14[%c0_71, %c88] : memref<8x96xbf16, #tpu.memory_space<vmem>>, vector<8x4xbf16>
    %167 = vector.shape_cast %166 : vector<8x4xbf16> to vector<1x8x4xbf16>
    "tpu.trace_start"() <{level = 10 : i32, message = "bnd,bmd->bnm"}> : () -> ()
    %cst_72 = arith.constant dense<0.000000e+00> : vector<1x8x8xf32>
    %168 = tpu.matmul %163, %165, %cst_72 {dimension_numbers = #tpu.dot_dimension_numbers<[2], [2], [1], [1], [0, 0, 0, 1, 1, 1], [0], [0]>} : vector<1x8x4xbf16>, vector<1x8x4xbf16>, vector<1x8x8xf32> -> vector<1x8x8xf32>
    "tpu.trace_stop"() : () -> ()
    %cst_73 = arith.constant dense<0xFF800000> : vector<1x8xf32>
    %169 = vector.multi_reduction <maximumf>, %168, %cst_73 [2] : vector<1x8x8xf32> to vector<1x8xf32>
    %170 = vector.shape_cast %169 : vector<1x8xf32> to vector<1x8x1xf32>
    %171 = vector.broadcast %170 : vector<1x8x1xf32> to vector<1x8x8xf32>
    %172 = arith.subf %168, %171 : vector<1x8x8xf32>
    %173 = math.exp %172 : vector<1x8x8xf32>
    %cst_74 = arith.constant dense<0.000000e+00> : vector<1x8xf32>
    %174 = vector.multi_reduction <add>, %173, %cst_74 [2] : vector<1x8x8xf32> to vector<1x8xf32>
    %175 = vector.shape_cast %174 : vector<1x8xf32> to vector<1x8x1xf32>
    %176 = tpu.reciprocal %175 {approx = true} : vector<1x8x1xf32> -> vector<1x8x1xf32>
    %177 = vector.broadcast %176 : vector<1x8x1xf32> to vector<1x8x8xf32>
    %178 = arith.mulf %173, %177 : vector<1x8x8xf32>
    %179 = arith.truncf %178 : vector<1x8x8xf32> to vector<1x8x8xbf16>
    "tpu.trace_start"() <{level = 10 : i32, message = "bnm,bmd->bnd"}> : () -> ()
    %cst_75 = arith.constant dense<0.000000e+00> : vector<1x8x4xf32>
    %180 = tpu.matmul %179, %167, %cst_75 {dimension_numbers = #tpu.dot_dimension_numbers<[2], [1], [1], [2], [0, 0, 0, 1, 1, 2], [0], [0]>} : vector<1x8x8xbf16>, vector<1x8x4xbf16>, vector<1x8x4xf32> -> vector<1x8x4xf32>
    "tpu.trace_stop"() : () -> ()
    %181 = vector.shape_cast %180 : vector<1x8x4xf32> to vector<8x4xf32>
    %182 = arith.truncf %181 : vector<8x4xf32> to vector<8x4xbf16>
    %c0_76 = arith.constant 0 : index
    %c24_77 = arith.constant 24 : index
    %183 = vector.load %arg15[%c0_76, %c24_77] : memref<8x32xbf16, #tpu.memory_space<vmem>>, vector<8x4xbf16>
    tpu.vector_store %arg15[%c0_76, %c24_77], %182 {strides = array<i32>} : memref<8x32xbf16, #tpu.memory_space<vmem>>, vector<8x4xbf16>,
    %c0_78 = arith.constant 0 : index
    %c28 = arith.constant 28 : index
    %184 = vector.load %arg14[%c0_78, %c28] : memref<8x96xbf16, #tpu.memory_space<vmem>>, vector<8x4xbf16>
    %185 = vector.shape_cast %184 : vector<8x4xbf16> to vector<1x8x4xbf16>
    %c0_79 = arith.constant 0 : index
    %c60 = arith.constant 60 : index
    %186 = vector.load %arg14[%c0_79, %c60] : memref<8x96xbf16, #tpu.memory_space<vmem>>, vector<8x4xbf16>
    %187 = vector.shape_cast %186 : vector<8x4xbf16> to vector<1x8x4xbf16>
    %c0_80 = arith.constant 0 : index
    %c92 = arith.constant 92 : index
    %188 = vector.load %arg14[%c0_80, %c92] : memref<8x96xbf16, #tpu.memory_space<vmem>>, vector<8x4xbf16>
    %189 = vector.shape_cast %188 : vector<8x4xbf16> to vector<1x8x4xbf16>
    "tpu.trace_start"() <{level = 10 : i32, message = "bnd,bmd->bnm"}> : () -> ()
    %cst_81 = arith.constant dense<0.000000e+00> : vector<1x8x8xf32>
    %190 = tpu.matmul %185, %187, %cst_81 {dimension_numbers = #tpu.dot_dimension_numbers<[2], [2], [1], [1], [0, 0, 0, 1, 1, 1], [0], [0]>} : vector<1x8x4xbf16>, vector<1x8x4xbf16>, vector<1x8x8xf32> -> vector<1x8x8xf32>
    "tpu.trace_stop"() : () -> ()
    %cst_82 = arith.constant dense<0xFF800000> : vector<1x8xf32>
    %191 = vector.multi_reduction <maximumf>, %190, %cst_82 [2] : vector<1x8x8xf32> to vector<1x8xf32>
    %192 = vector.shape_cast %191 : vector<1x8xf32> to vector<1x8x1xf32>
    %193 = vector.broadcast %192 : vector<1x8x1xf32> to vector<1x8x8xf32>
    %194 = arith.subf %190, %193 : vector<1x8x8xf32>
    %195 = math.exp %194 : vector<1x8x8xf32>
    %cst_83 = arith.constant dense<0.000000e+00> : vector<1x8xf32>
    %196 = vector.multi_reduction <add>, %195, %cst_83 [2] : vector<1x8x8xf32> to vector<1x8xf32>
    %197 = vector.shape_cast %196 : vector<1x8xf32> to vector<1x8x1xf32>
    %198 = tpu.reciprocal %197 {approx = true} : vector<1x8x1xf32> -> vector<1x8x1xf32>
    %199 = vector.broadcast %198 : vector<1x8x1xf32> to vector<1x8x8xf32>
    %200 = arith.mulf %195, %199 : vector<1x8x8xf32>
    %201 = arith.truncf %200 : vector<1x8x8xf32> to vector<1x8x8xbf16>
    "tpu.trace_start"() <{level = 10 : i32, message = "bnm,bmd->bnd"}> : () -> ()
    %cst_84 = arith.constant dense<0.000000e+00> : vector<1x8x4xf32>
    %202 = tpu.matmul %201, %189, %cst_84 {dimension_numbers = #tpu.dot_dimension_numbers<[2], [1], [1], [2], [0, 0, 0, 1, 1, 2], [0], [0]>} : vector<1x8x8xbf16>, vector<1x8x4xbf16>, vector<1x8x4xf32> -> vector<1x8x4xf32>
    "tpu.trace_stop"() : () -> ()
    %203 = vector.shape_cast %202 : vector<1x8x4xf32> to vector<8x4xf32>
    %204 = arith.truncf %203 : vector<8x4xf32> to vector<8x4xbf16>
    %c0_85 = arith.constant 0 : index
    %c28_86 = arith.constant 28 : index
    %205 = vector.load %arg15[%c0_85, %c28_86] : memref<8x32xbf16, #tpu.memory_space<vmem>>, vector<8x4xbf16>
    tpu.vector_store %arg15[%c0_85, %c28_86], %204 {strides = array<i32>} : memref<8x32xbf16, #tpu.memory_space<vmem>>, vector<8x4xbf16>,
    %c0_87 = arith.constant 0 : index
    %c0_88 = arith.constant 0 : index
    %206 = vector.load %arg15[%c0_87, %c0_88] : memref<8x32xbf16, #tpu.memory_space<vmem>>, vector<8x32xbf16>
    %c0_89 = arith.constant 0 : index
    %c0_90 = arith.constant 0 : index
    %207 = vector.load %arg5[%c0_89, %c0_90] : memref<32x32xbf16, #tpu.memory_space<vmem>>, vector<32x32xbf16>
    %cst_91 = arith.constant dense<0.000000e+00> : vector<8x32xf32>
    %208 = tpu.matmul %206, %207, %cst_91 {dimension_numbers = #tpu.dot_dimension_numbers<[1], [0], [0], [1], [0, 0, 1, 1], [], []>} : vector<8x32xbf16>, vector<32x32xbf16>, vector<8x32xf32> -> vector<8x32xf32>
    %209 = arith.addf %0, %208 : vector<8x32xf32>
    %c0_92 = arith.constant 0 : index
    %c0_93 = arith.constant 0 : index
    %210 = vector.load %arg6[%c0_92, %c0_93] : memref<1x32xf32, #tpu.memory_space<vmem>>, vector<1x32xf32>
    %211 = vector.broadcast %210 : vector<1x32xf32> to vector<8x32xf32>
    %212 = arith.addf %209, %211 : vector<8x32xf32>
    %c0_94 = arith.constant 0 : index
    %c0_95 = arith.constant 0 : index
    %213 = vector.load %arg7[%c0_94, %c0_95] : memref<1x32xf32, #tpu.memory_space<vmem>>, vector<1x32xf32>
    %c0_96 = arith.constant 0 : index
    %c0_97 = arith.constant 0 : index
    %214 = vector.load %arg8[%c0_96, %c0_97] : memref<1x32xf32, #tpu.memory_space<vmem>>, vector<1x32xf32>
    %cst_98 = arith.constant dense<0.000000e+00> : vector<8xf32>
    %215 = vector.multi_reduction <add>, %212, %cst_98 [1] : vector<8x32xf32> to vector<8xf32>
    %216 = vector.shape_cast %215 : vector<8xf32> to vector<8x1xf32>
    %cst_99 = arith.constant 3.200000e+01 : f32
    %217 = vector.broadcast %cst_99 : f32 to vector<8x1xf32>
    %218 = arith.divf %216, %217 : vector<8x1xf32>
    %219 = vector.broadcast %218 : vector<8x1xf32> to vector<8x32xf32>
    %220 = arith.subf %212, %219 : vector<8x32xf32>
    %221 = arith.mulf %220, %220 : vector<8x32xf32>
    %cst_100 = arith.constant dense<0.000000e+00> : vector<8xf32>
    %222 = vector.multi_reduction <add>, %221, %cst_100 [1] : vector<8x32xf32> to vector<8xf32>
    %223 = vector.shape_cast %222 : vector<8xf32> to vector<8x1xf32>
    %cst_101 = arith.constant 3.200000e+01 : f32
    %224 = vector.broadcast %cst_101 : f32 to vector<8x1xf32>
    %225 = arith.divf %223, %224 : vector<8x1xf32>
    %226 = vector.broadcast %218 : vector<8x1xf32> to vector<8x32xf32>
    %227 = arith.subf %212, %226 : vector<8x32xf32>
    %cst_102 = arith.constant 9.99999974E-6 : f32
    %228 = vector.broadcast %cst_102 : f32 to vector<8x1xf32>
    %229 = arith.addf %225, %228 : vector<8x1xf32>
    %230 = math.rsqrt %229 : vector<8x1xf32>
    %231 = vector.broadcast %230 : vector<8x1xf32> to vector<8x32xf32>
    %232 = arith.mulf %227, %231 : vector<8x32xf32>
    %233 = vector.broadcast %213 : vector<1x32xf32> to vector<8x32xf32>
    %234 = arith.mulf %232, %233 : vector<8x32xf32>
    %235 = vector.broadcast %214 : vector<1x32xf32> to vector<8x32xf32>
    %236 = arith.addf %234, %235 : vector<8x32xf32>
    %237 = arith.truncf %236 : vector<8x32xf32> to vector<8x32xbf16>
    %cst_103 = arith.constant 0.000000e+00 : f32
    %238 = vector.broadcast %cst_103 : f32 to vector<8x32xf32>
    %c0_104 = arith.constant 0 : index
    %c0_105 = arith.constant 0 : index
    %239 = vector.load %arg9[%c0_104, %c0_105] : memref<32x128xbf16, #tpu.memory_space<vmem>>, vector<32x128xbf16>
    %cst_106 = arith.constant dense<0.000000e+00> : vector<8x128xf32>
    %240 = tpu.matmul %237, %239, %cst_106 {dimension_numbers = #tpu.dot_dimension_numbers<[1], [0], [0], [1], [0, 0, 1, 1], [], []>} : vector<8x32xbf16>, vector<32x128xbf16>, vector<8x128xf32> -> vector<8x128xf32>
    %c0_107 = arith.constant 0 : index
    %c0_108 = arith.constant 0 : index
    %241 = vector.load %arg10[%c0_107, %c0_108] : memref<1x128xf32, #tpu.memory_space<vmem>>, vector<1x128xf32>
    %242 = vector.broadcast %241 : vector<1x128xf32> to vector<8x128xf32>
    %243 = arith.addf %240, %242 : vector<8x128xf32>
    %cst_109 = arith.constant 5.000000e-01 : f32
    %244 = vector.broadcast %cst_109 : f32 to vector<8x128xf32>
    %245 = arith.mulf %244, %243 : vector<8x128xf32>
    %246 = arith.mulf %243, %243 : vector<8x128xf32>
    %247 = arith.mulf %246, %243 : vector<8x128xf32>
    %cst_110 = arith.constant 4.471500e-02 : f32
    %248 = vector.broadcast %cst_110 : f32 to vector<8x128xf32>
    %249 = arith.mulf %248, %247 : vector<8x128xf32>
    %250 = arith.addf %243, %249 : vector<8x128xf32>
    %cst_111 = arith.constant 0.797884583 : f32
    %251 = vector.broadcast %cst_111 : f32 to vector<8x128xf32>
    %252 = arith.mulf %251, %250 : vector<8x128xf32>
    %253 = math.tanh %252 : vector<8x128xf32>
    %cst_112 = arith.constant 1.000000e+00 : f32
    %254 = vector.broadcast %cst_112 : f32 to vector<8x128xf32>
    %255 = arith.addf %254, %253 : vector<8x128xf32>
    %256 = arith.mulf %245, %255 : vector<8x128xf32>
    %257 = arith.truncf %256 : vector<8x128xf32> to vector<8x128xbf16>
    %c0_113 = arith.constant 0 : index
    %c0_114 = arith.constant 0 : index
    %258 = vector.load %arg11[%c0_113, %c0_114] : memref<128x32xbf16, #tpu.memory_space<vmem>>, vector<128x32xbf16>
    %cst_115 = arith.constant dense<0.000000e+00> : vector<8x32xf32>
    %259 = tpu.matmul %257, %258, %cst_115 {dimension_numbers = #tpu.dot_dimension_numbers<[1], [0], [0], [1], [0, 0, 1, 1], [], []>} : vector<8x128xbf16>, vector<128x32xbf16>, vector<8x32xf32> -> vector<8x32xf32>
    %260 = arith.addf %238, %259 : vector<8x32xf32>
    %261 = arith.addf %212, %260 : vector<8x32xf32>
    %c0_116 = arith.constant 0 : index
    %c0_117 = arith.constant 0 : index
    %262 = vector.load %arg12[%c0_116, %c0_117] : memref<1x32xf32, #tpu.memory_space<vmem>>, vector<1x32xf32>
    %263 = vector.broadcast %262 : vector<1x32xf32> to vector<8x32xf32>
    %264 = arith.addf %261, %263 : vector<8x32xf32>
    %c0_118 = arith.constant 0 : index
    %c0_119 = arith.constant 0 : index
    %265 = vector.load %arg13[%c0_118, %c0_119] : memref<8x32xf32, #tpu.memory_space<vmem>>, vector<8x32xf32>
    tpu.vector_store %arg13[%c0_118, %c0_119], %264 {strides = array<i32>} : memref<8x32xf32, #tpu.memory_space<vmem>>, vector<8x32xf32>,
    return
  }
  func.func @transform_0(%arg0: i32) -> (i32, i32) {
    %c0_i32 = arith.constant 0 : i32
    %c0_i32_0 = arith.constant 0 : i32
    return %arg0, %c0_i32 : i32, i32
  }
  func.func @transform_1(%arg0: i32) -> (i32, i32) {
    %c0_i32 = arith.constant 0 : i32
    %c0_i32_0 = arith.constant 0 : i32
    %c0_i32_1 = arith.constant 0 : i32
    return %c0_i32, %c0_i32_0 : i32, i32
  }
  func.func @transform_2(%arg0: i32) -> (i32, i32) {
    %c0_i32 = arith.constant 0 : i32
    %c0_i32_0 = arith.constant 0 : i32
    %c0_i32_1 = arith.constant 0 : i32
    return %c0_i32, %c0_i32_0 : i32, i32
  }
  func.func @transform_3(%arg0: i32) -> (i32, i32) {
    %c0_i32 = arith.constant 0 : i32
    %c0_i32_0 = arith.constant 0 : i32
    %c0_i32_1 = arith.constant 0 : i32
    return %c0_i32, %c0_i32_0 : i32, i32
  }
  func.func @transform_4(%arg0: i32) -> (i32, i32) {
    %c0_i32 = arith.constant 0 : i32
    %c0_i32_0 = arith.constant 0 : i32
    %c0_i32_1 = arith.constant 0 : i32
    return %c0_i32, %c0_i32_0 : i32, i32
  }
  func.func @transform_5(%arg0: i32) -> (i32, i32) {
    %c0_i32 = arith.constant 0 : i32
    %c0_i32_0 = arith.constant 0 : i32
    %c0_i32_1 = arith.constant 0 : i32
    return %c0_i32, %c0_i32_0 : i32, i32
  }
  func.func @transform_6(%arg0: i32) -> (i32, i32) {
    %c0_i32 = arith.constant 0 : i32
    %c0_i32_0 = arith.constant 0 : i32
    %c0_i32_1 = arith.constant 0 : i32
    return %c0_i32, %c0_i32_0 : i32, i32
  }
  func.func @transform_7(%arg0: i32) -> (i32, i32) {
    %c0_i32 = arith.constant 0 : i32
    %c0_i32_0 = arith.constant 0 : i32
    %c0_i32_1 = arith.constant 0 : i32
    return %c0_i32, %c0_i32_0 : i32, i32
  }
  func.func @transform_8(%arg0: i32) -> (i32, i32) {
    %c0_i32 = arith.constant 0 : i32
    %c0_i32_0 = arith.constant 0 : i32
    %c0_i32_1 = arith.constant 0 : i32
    return %c0_i32, %c0_i32_0 : i32, i32
  }
  func.func @transform_9(%arg0: i32) -> (i32, i32) {
    %c0_i32 = arith.constant 0 : i32
    %c0_i32_0 = arith.constant 0 : i32
    %c0_i32_1 = arith.constant 0 : i32
    return %c0_i32, %c0_i32_0 : i32, i32
  }
  func.func @transform_10(%arg0: i32) -> (i32, i32) {
    %c0_i32 = arith.constant 0 : i32
    %c0_i32_0 = arith.constant 0 : i32
    %c0_i32_1 = arith.constant 0 : i32
    return %c0_i32, %c0_i32_0 : i32, i32
  }
  func.func @transform_11(%arg0: i32) -> (i32, i32) {
    %c0_i32 = arith.constant 0 : i32
    %c0_i32_0 = arith.constant 0 : i32
    %c0_i32_1 = arith.constant 0 : i32
    return %c0_i32, %c0_i32_0 : i32, i32
  }
  func.func @transform_12(%arg0: i32) -> (i32, i32) {
    %c0_i32 = arith.constant 0 : i32
    %c0_i32_0 = arith.constant 0 : i32
    return %arg0, %c0_i32 : i32, i32
  }
}

</mosaic_0001>

<llo_original>
// kernel: vit_block.1
$region0: #{vit_block.1}
  #allocation0 [shape = 'u32[]', space=smem, size = 0x4, offset = 0x4, fixed_abs, tag = 'smem constant byte address 0x4 - core index']
  #allocation1 [shape = 'u32[144,128]{1,0:T(1,128)}', space=vmem, size = 0x12000, scoped, tag = 'internal scratch']
  #allocation2 [shape = 'bf16[8,96]{1,0:T(8,128)(2,1)}', space=vmem, size = 0x800, scoped, tag = 'scratch operand']
  #allocation3 [shape = 'bf16[8,32]{1,0:T(8,128)(2,1)}', space=vmem, size = 0x800, scoped, tag = 'scratch operand']
  %s0 = inlined_call_operand.vmem [shape: f32[16,32], index: 0, kind: input, shape index: {}, may-alias: {0,12}]
  %s1 = inlined_call_operand.vmem [shape: f32[1,32], index: 1, kind: input, shape index: {}]
  %s2 = inlined_call_operand.vmem [shape: f32[1,32], index: 2, kind: input, shape index: {}]
  %s3 = inlined_call_operand.vmem [shape: bf16[32,96], index: 3, kind: input, shape index: {}]
  %s4 = inlined_call_operand.vmem [shape: bf16[32,32], index: 4, kind: input, shape index: {}]
  %s5 = inlined_call_operand.vmem [shape: f32[1,32], index: 5, kind: input, shape index: {}]
  %s6 = inlined_call_operand.vmem [shape: f32[1,32], index: 6, kind: input, shape index: {}]
  %s7 = inlined_call_operand.vmem [shape: f32[1,32], index: 7, kind: input, shape index: {}]
  %s8 = inlined_call_operand.vmem [shape: bf16[32,128], index: 8, kind: input, shape index: {}]
  %s9 = inlined_call_operand.vmem [shape: f32[1,128], index: 9, kind: input, shape index: {}]
  %s10 = inlined_call_operand.vmem [shape: bf16[128,32], index: 10, kind: input, shape index: {}]
  %s11 = inlined_call_operand.vmem [shape: f32[1,32], index: 11, kind: input, shape index: {}]
  %s12 = inlined_call_operand.vmem [shape: f32[16,32], index: 12, kind: output, shape index: {}, may-alias: {0,12}]
  %s13 = sld [smem:[#allocation0]]
  $region81: #{vit_block.1} parent=0
    _
  %s15 = ssub.s32 1, %s13
  %s16 = scalar_select 0, %s15, %s13
  loop: start=0, step=1, limit=4
  $region2: #{vit_block.1} parent=0 // loop_pre_header
    _
  $region3: #{vit_block.1} parent=0 // loop_header
    %s18 = sphi 0, %s22
    %p19 = scmp.ge.s32.totalorder %s18, 4
    %s28 = sphi 0, %s30
    %s31 = sphi 0, %s28
    %s32 = sphi 0, %s31
    %s48 = sphi 0, %s32
    %s52 = sphi 0, %s52
    %s54 = sphi 0, %s52
    %s55 = sphi 0, %s54
    %s69 = sphi 0, %s55
    %s73 = sphi 0, %s73
    %s75 = sphi 0, %s73
    %s76 = sphi 0, %s75
    %s90 = sphi 0, %s76
    %s94 = sphi 0, %s94
    %s96 = sphi 0, %s94
    %s97 = sphi 0, %s96
    %s111 = sphi 0, %s97
    %s115 = sphi 0, %s115
    %s117 = sphi 0, %s115
    %s118 = sphi 0, %s117
    %s132 = sphi 0, %s118
    %s136 = sphi 0, %s136
    %s138 = sphi 0, %s136
    %s139 = sphi 0, %s138
    %s153 = sphi 0, %s139
    %s157 = sphi 0, %s157
    %s159 = sphi 0, %s157
    %s160 = sphi 0, %s159
    %s174 = sphi 0, %s160
    %s178 = sphi 0, %s178
    %s180 = sphi 0, %s178
    %s181 = sphi 0, %s180
    %s195 = sphi 0, %s181
    %s199 = sphi 0, %s199
    %s201 = sphi 0, %s199
    %s202 = sphi 0, %s201
    %s216 = sphi 0, %s202
    %s220 = sphi 0, %s220
    %s222 = sphi 0, %s220
    %s223 = sphi 0, %s222
    %s237 = sphi 0, %s223
    %s241 = sphi 0, %s241
    %s243 = sphi 0, %s241
    %s244 = sphi 0, %s243
    %s258 = sphi 0, %s244
    %s262 = sphi 0, %s262
    %s264 = sphi 0, %s262
    %s265 = sphi 0, %s264
    %s279 = sphi 0, %s265
    %s285 = sphi 0, %s287
    %s288 = sphi 0, %s285
    %s289 = sphi 0, %s288
    %s305 = sphi 0, %s289
  $region4: #{vit_block.1} parent=0 // loop_header_branch
    %21 = sbr.rel (%p19) target = $region8
  $region5: #{vit_block.1} parent=0 // loop_body
    %s23 = ssub.s32 %s18, 1
    %s24 = ssub.s32 %s18, 2
    %s25 = sadd.s32 %s18, 1
    %s26 = ssub.s32 %s18, %s25
    %p27 = scmp.eq.s32.totalorder %s26, 0
    %s29 = sadd.s32 %s28, 1
    %s30 = scalar_select %p27, %s28, %s29
    %p33 = pneg %p27
    %p34 = scmp.eq.s32.totalorder %s18, 1
    %p35 = por %p33, %p34
    %p36 = scmp.ne.s32.totalorder %s28, %s31
    %p37 = scmp.eq.s32.totalorder %s18, 0
    %p38 = por %p36, %p37
    %p39 = scmp.ne.s32.totalorder %s28, %s31
    %p40 = scmp.eq.s32.totalorder %s23, 1
    %p41 = por %p39, %p40
    %p42 = scmp.ne.s32.totalorder %s31, %s32
    %p43 = scmp.eq.s32.totalorder %s23, 0
    %p44 = por %p42, %p43
    %p45 = scmp.ne.s32.totalorder %s31, %s32
    %p46 = scmp.eq.s32.totalorder %s24, 1
    %p47 = por %p45, %p46
    %p49 = scmp.ne.s32.totalorder %s32, %s48
    %p50 = scmp.eq.s32.totalorder %s24, 0
    %p51 = por %p49, %p50
    %s53 = sadd.s32 %s52, 1
    %p56 = scmp.eq.s32.totalorder %s18, 1
    %p57 = scmp.ne.s32.totalorder %s52, %s54
    %p58 = scmp.eq.s32.totalorder %s18, 0
    %p59 = por %p57, %p58
    %p60 = scmp.ne.s32.totalorder %s52, %s54
    %p61 = scmp.eq.s32.totalorder %s23, 1
    %p62 = por %p60, %p61
    %p63 = scmp.ne.s32.totalorder %s54, %s55
    %p64 = scmp.eq.s32.totalorder %s23, 0
    %p65 = por %p63, %p64
    %p66 = scmp.ne.s32.totalorder %s54, %s55
    %p67 = scmp.eq.s32.totalorder %s24, 1
    %p68 = por %p66, %p67
    %p70 = scmp.ne.s32.totalorder %s55, %s69
    %p71 = scmp.eq.s32.totalorder %s24, 0
    %p72 = por %p70, %p71
    %s74 = sadd.s32 %s73, 1
    %p77 = scmp.eq.s32.totalorder %s18, 1
    %p78 = scmp.ne.s32.totalorder %s73, %s75
    %p79 = scmp.eq.s32.totalorder %s18, 0
    %p80 = por %p78, %p79
    %p81 = scmp.ne.s32.totalorder %s73, %s75
    %p82 = scmp.eq.s32.totalorder %s23, 1
    %p83 = por %p81, %p82
    %p84 = scmp.ne.s32.totalorder %s75, %s76
    %p85 = scmp.eq.s32.totalorder %s23, 0
    %p86 = por %p84, %p85
    %p87 = scmp.ne.s32.totalorder %s75, %s76
    %p88 = scmp.eq.s32.totalorder %s24, 1
    %p89 = por %p87, %p88
    %p91 = scmp.ne.s32.totalorder %s76, %s90
    %p92 = scmp.eq.s32.totalorder %s24, 0
    %p93 = por %p91, %p92
    %s95 = sadd.s32 %s94, 1
    %p98 = scmp.eq.s32.totalorder %s18, 1
    %p99 = scmp.ne.s32.totalorder %s94, %s96
    %p100 = scmp.eq.s32.totalorder %s18, 0
    %p101 = por %p99, %p100
    %p102 = scmp.ne.s32.totalorder %s94, %s96
    %p103 = scmp.eq.s32.totalorder %s23, 1
    %p104 = por %p102, %p103
    %p105 = scmp.ne.s32.totalorder %s96, %s97
    %p106 = scmp.eq.s32.totalorder %s23, 0
    %p107 = por %p105, %p106
    %p108 = scmp.ne.s32.totalorder %s96, %s97
    %p109 = scmp.eq.s32.totalorder %s24, 1
    %p110 = por %p108, %p109
    %p112 = scmp.ne.s32.totalorder %s97, %s111
    %p113 = scmp.eq.s32.totalorder %s24, 0
    %p114 = por %p112, %p113
    %s116 = sadd.s32 %s115, 1
    %p119 = scmp.eq.s32.totalorder %s18, 1
    %p120 = scmp.ne.s32.totalorder %s115, %s117
    %p121 = scmp.eq.s32.totalorder %s18, 0
    %p122 = por %p120, %p121
    %p123 = scmp.ne.s32.totalorder %s115, %s117
    %p124 = scmp.eq.s32.totalorder %s23, 1
    %p125 = por %p123, %p124
    %p126 = scmp.ne.s32.totalorder %s117, %s118
    %p127 = scmp.eq.s32.totalorder %s23, 0
    %p128 = por %p126, %p127
    %p129 = scmp.ne.s32.totalorder %s117, %s118
    %p130 = scmp.eq.s32.totalorder %s24, 1
    %p131 = por %p129, %p130
    %p133 = scmp.ne.s32.totalorder %s118, %s132
    %p134 = scmp.eq.s32.totalorder %s24, 0
    %p135 = por %p133, %p134
    %s137 = sadd.s32 %s136, 1
    %p140 = scmp.eq.s32.totalorder %s18, 1
    %p141 = scmp.ne.s32.totalorder %s136, %s138
    %p142 = scmp.eq.s32.totalorder %s18, 0
    %p143 = por %p141, %p142
    %p144 = scmp.ne.s32.totalorder %s136, %s138
    %p145 = scmp.eq.s32.totalorder %s23, 1
    %p146 = por %p144, %p145
    %p147 = scmp.ne.s32.totalorder %s138, %s139
    %p148 = scmp.eq.s32.totalorder %s23, 0
    %p149 = por %p147, %p148
    %p150 = scmp.ne.s32.totalorder %s138, %s139
    %p151 = scmp.eq.s32.totalorder %s24, 1
    %p152 = por %p150, %p151
    %p154 = scmp.ne.s32.totalorder %s139, %s153
    %p155 = scmp.eq.s32.totalorder %s24, 0
    %p156 = por %p154, %p155
    %s158 = sadd.s32 %s157, 1
    %p161 = scmp.eq.s32.totalorder %s18, 1
    %p162 = scmp.ne.s32.totalorder %s157, %s159
    %p163 = scmp.eq.s32.totalorder %s18, 0
    %p164 = por %p162, %p163
    %p165 = scmp.ne.s32.totalorder %s157, %s159
    %p166 = scmp.eq.s32.totalorder %s23, 1
    %p167 = por %p165, %p166
    %p168 = scmp.ne.s32.totalorder %s159, %s160
    %p169 = scmp.eq.s32.totalorder %s23, 0
    %p170 = por %p168, %p169
    %p171 = scmp.ne.s32.totalorder %s159, %s160
    %p172 = scmp.eq.s32.totalorder %s24, 1
    %p173 = por %p171, %p172
    %p175 = scmp.ne.s32.totalorder %s160, %s174
    %p176 = scmp.eq.s32.totalorder %s24, 0
    %p177 = por %p175, %p176
    %s179 = sadd.s32 %s178, 1
    %p182 = scmp.eq.s32.totalorder %s18, 1
    %p183 = scmp.ne.s32.totalorder %s178, %s180
    %p184 = scmp.eq.s32.totalorder %s18, 0
    %p185 = por %p183, %p184
    %p186 = scmp.ne.s32.totalorder %s178, %s180
    %p187 = scmp.eq.s32.totalorder %s23, 1
    %p188 = por %p186, %p187
    %p189 = scmp.ne.s32.totalorder %s180, %s181
    %p190 = scmp.eq.s32.totalorder %s23, 0
    %p191 = por %p189, %p190
    %p192 = scmp.ne.s32.totalorder %s180, %s181
    %p193 = scmp.eq.s32.totalorder %s24, 1
    %p194 = por %p192, %p193
    %p196 = scmp.ne.s32.totalorder %s181, %s195
    %p197 = scmp.eq.s32.totalorder %s24, 0
    %p198 = por %p196, %p197
    %s200 = sadd.s32 %s199, 1
    %p203 = scmp.eq.s32.totalorder %s18, 1
    %p204 = scmp.ne.s32.totalorder %s199, %s201
    %p205 = scmp.eq.s32.totalorder %s18, 0
    %p206 = por %p204, %p205
    %p207 = scmp.ne.s32.totalorder %s199, %s201
    %p208 = scmp.eq.s32.totalorder %s23, 1
    %p209 = por %p207, %p208
    %p210 = scmp.ne.s32.totalorder %s201, %s202
    %p211 = scmp.eq.s32.totalorder %s23, 0
    %p212 = por %p210, %p211
    %p213 = scmp.ne.s32.totalorder %s201, %s202
    %p214 = scmp.eq.s32.totalorder %s24, 1
    %p215 = por %p213, %p214
    %p217 = scmp.ne.s32.totalorder %s202, %s216
    %p218 = scmp.eq.s32.totalorder %s24, 0
    %p219 = por %p217, %p218
    %s221 = sadd.s32 %s220, 1
    %p224 = scmp.eq.s32.totalorder %s18, 1
    %p225 = scmp.ne.s32.totalorder %s220, %s222
    %p226 = scmp.eq.s32.totalorder %s18, 0
    %p227 = por %p225, %p226
    %p228 = scmp.ne.s32.totalorder %s220, %s222
    %p229 = scmp.eq.s32.totalorder %s23, 1
    %p230 = por %p228, %p229
    %p231 = scmp.ne.s32.totalorder %s222, %s223
    %p232 = scmp.eq.s32.totalorder %s23, 0
    %p233 = por %p231, %p232
    %p234 = scmp.ne.s32.totalorder %s222, %s223
    %p235 = scmp.eq.s32.totalorder %s24, 1
    %p236 = por %p234, %p235
    %p238 = scmp.ne.s32.totalorder %s223, %s237
    %p239 = scmp.eq.s32.totalorder %s24, 0
    %p240 = por %p238, %p239
    %s242 = sadd.s32 %s241, 1
    %p245 = scmp.eq.s32.totalorder %s18, 1
    %p246 = scmp.ne.s32.totalorder %s241, %s243
    %p247 = scmp.eq.s32.totalorder %s18, 0
    %p248 = por %p246, %p247
    %p249 = scmp.ne.s32.totalorder %s241, %s243
    %p250 = scmp.eq.s32.totalorder %s23, 1
    %p251 = por %p249, %p250
    %p252 = scmp.ne.s32.totalorder %s243, %s244
    %p253 = scmp.eq.s32.totalorder %s23, 0
    %p254 = por %p252, %p253
    %p255 = scmp.ne.s32.totalorder %s243, %s244
    %p256 = scmp.eq.s32.totalorder %s24, 1
    %p257 = por %p255, %p256
    %p259 = scmp.ne.s32.totalorder %s244, %s258
    %p260 = scmp.eq.s32.totalorder %s24, 0
    %p261 = por %p259, %p260
    %s263 = sadd.s32 %s262, 1
    %p266 = scmp.eq.s32.totalorder %s18, 1
    %p267 = scmp.ne.s32.totalorder %s262, %s264
    %p268 = scmp.eq.s32.totalorder %s18, 0
    %p269 = por %p267, %p268
    %p270 = scmp.ne.s32.totalorder %s262, %s264
    %p271 = scmp.eq.s32.totalorder %s23, 1
    %p272 = por %p270, %p271
    %p273 = scmp.ne.s32.totalorder %s264, %s265
    %p274 = scmp.eq.s32.totalorder %s23, 0
    %p275 = por %p273, %p274
    %p276 = scmp.ne.s32.totalorder %s264, %s265
    %p277 = scmp.eq.s32.totalorder %s24, 1
    %p278 = por %p276, %p277
    %p280 = scmp.ne.s32.totalorder %s265, %s279
    %p281 = scmp.eq.s32.totalorder %s24, 0
    %p282 = por %p280, %p281
    %s283 = ssub.s32 %s18, %s25
    %p284 = scmp.eq.s32.totalorder %s283, 0
    %s286 = sadd.s32 %s285, 1
    %s287 = scalar_select %p284, %s285, %s286
    %p290 = pneg %p284
    %p291 = scmp.eq.s32.totalorder %s18, 1
    %p292 = por %p290, %p291
    %p293 = scmp.ne.s32.totalorder %s285, %s288
    %p294 = scmp.eq.s32.totalorder %s18, 0
    %p295 = por %p293, %p294
    %p296 = scmp.ne.s32.totalorder %s285, %s288
    %p297 = scmp.eq.s32.totalorder %s23, 1
    %p298 = por %p296, %p297
    %p299 = scmp.ne.s32.totalorder %s288, %s289
    %p300 = scmp.eq.s32.totalorder %s23, 0
    %p301 = por %p299, %p300
    %p302 = scmp.ne.s32.totalorder %s288, %s289
    %p303 = scmp.eq.s32.totalorder %s24, 1
    %p304 = por %p302, %p303
    %p306 = scmp.ne.s32.totalorder %s289, %s305
    %p307 = scmp.eq.s32.totalorder %s24, 0
    %p308 = por %p306, %p307
    %p309 = scmp.le.s32.totalorder 1, %s18
    %p310 = scmp.lt.s32.totalorder %s18, 3
    %p311 = pnand %p309, %p310
    %p312 = pneg %p311
    // Predicated region
    $region9: #{vit_block.1} parent=5 // pred_check
      _
    $region10: #{vit_block.1} parent=5 // pred_check_branch
      %314 = sbr.rel (%p311) target = $region12
    $region11: #{vit_block.1} parent=5 // pred_region
      %s315 = ssub.s32 %s18, 1
      // Predicated region
      $region13: #{vit_block.1} parent=11 // pred_check
        %p316 = pneg %p65
      $region14: #{vit_block.1} parent=11 // pred_check_branch
        %318 = sbr.rel (%p316) target = $region16
      $region15: #{vit_block.1} parent=11 // pred_region
        _
      $region16: #{vit_block.1} parent=11 // pred_fallthru
        _
      // Predicated region
      $region17: #{vit_block.1} parent=11 // pred_check
        %p319 = pneg %p86
      $region18: #{vit_block.1} parent=11 // pred_check_branch
        %321 = sbr.rel (%p319) target = $region20
      $region19: #{vit_block.1} parent=11 // pred_region
        _
      $region20: #{vit_block.1} parent=11 // pred_fallthru
        _
      // Predicated region
      $region21: #{vit_block.1} parent=11 // pred_check
        %p322 = pneg %p107
      $region22: #{vit_block.1} parent=11 // pred_check_branch
        %324 = sbr.rel (%p322) target = $region24
      $region23: #{vit_block.1} parent=11 // pred_region
        _
      $region24: #{vit_block.1} parent=11 // pred_fallthru
        _
      // Predicated region
      $region25: #{vit_block.1} parent=11 // pred_check
        %p325 = pneg %p128
      $region26: #{vit_block.1} parent=11 // pred_check_branch
        %327 = sbr.rel (%p325) target = $region28
      $region27: #{vit_block.1} parent=11 // pred_region
        _
      $region28: #{vit_block.1} parent=11 // pred_fallthru
        _
      // Predicated region
      $region29: #{vit_block.1} parent=11 // pred_check
        %p328 = pneg %p149
      $region30: #{vit_block.1} parent=11 // pred_check_branch
        %330 = sbr.rel (%p328) target = $region32
      $region31: #{vit_block.1} parent=11 // pred_region
        _
      $region32: #{vit_block.1} parent=11 // pred_fallthru
        _
      // Predicated region
      $region33: #{vit_block.1} parent=11 // pred_check
        %p331 = pneg %p170
      $region34: #{vit_block.1} parent=11 // pred_check_branch
        %333 = sbr.rel (%p331) target = $region36
      $region35: #{vit_block.1} parent=11 // pred_region
        _
      $region36: #{vit_block.1} parent=11 // pred_fallthru
        _
      // Predicated region
      $region37: #{vit_block.1} parent=11 // pred_check
        %p334 = pneg %p191
      $region38: #{vit_block.1} parent=11 // pred_check_branch
        %336 = sbr.rel (%p334) target = $region40
      $region39: #{vit_block.1} parent=11 // pred_region
        _
      $region40: #{vit_block.1} parent=11 // pred_fallthru
        _
      // Predicated region
      $region41: #{vit_block.1} parent=11 // pred_check
        %p337 = pneg %p212
      $region42: #{vit_block.1} parent=11 // pred_check_branch
        %339 = sbr.rel (%p337) target = $region44
      $region43: #{vit_block.1} parent=11 // pred_region
        _
      $region44: #{vit_block.1} parent=11 // pred_fallthru
        _
      // Predicated region
      $region45: #{vit_block.1} parent=11 // pred_check
        %p340 = pneg %p233
      $region46: #{vit_block.1} parent=11 // pred_check_branch
        %342 = sbr.rel (%p340) target = $region48
      $region47: #{vit_block.1} parent=11 // pred_region
        _
      $region48: #{vit_block.1} parent=11 // pred_fallthru
        _
      // Predicated region
      $region49: #{vit_block.1} parent=11 // pred_check
        %p343 = pneg %p254
      $region50: #{vit_block.1} parent=11 // pred_check_branch
        %345 = sbr.rel (%p343) target = $region52
      $region51: #{vit_block.1} parent=11 // pred_region
        _
      $region52: #{vit_block.1} parent=11 // pred_fallthru
        _
      // Predicated region
      $region53: #{vit_block.1} parent=11 // pred_check
        %p346 = pneg %p275
      $region54: #{vit_block.1} parent=11 // pred_check_branch
        %348 = sbr.rel (%p346) target = $region56
      $region55: #{vit_block.1} parent=11 // pred_region
        _
      $region56: #{vit_block.1} parent=11 // pred_fallthru
        _
    $region12: #{vit_block.1} parent=5 // pred_fallthru
      _
    %p349 = scmp.lt.s32.totalorder %s18, 2
    // Predicated region
    $region57: #{vit_block.1} parent=5 // pred_check
      %p350 = pneg %p349
    $region58: #{vit_block.1} parent=5 // pred_check_branch
      %352 = sbr.rel (%p350) target = $region60
    $region59: #{vit_block.1} parent=5 // pred_region
      // Predicated region
      $region61: #{vit_block.1} parent=59 // pred_check
        %p353 = pneg %p38
      $region62: #{vit_block.1} parent=59 // pred_check_branch
        %355 = sbr.rel (%p353) target = $region64
      $region63: #{vit_block.1} parent=59 // pred_region
        %p356 = scmp.lt.s32.totalorder %s18, 1
        %s357 = scalar_select %p356, %s18, 1
        %s358 = smul.addr %s357, 8
        %s359 = scalar_lea.vmem %s0, %s358
      $region64: #{vit_block.1} parent=59 // pred_fallthru
        _
    $region60: #{vit_block.1} parent=5 // pred_fallthru
      _
    %p360 = scmp.le.s32.totalorder 1, %s18
    %p361 = scmp.lt.s32.totalorder %s18, 3
    %p362 = pnand %p360, %p361
    %p363 = pneg %p362
    // Predicated region
    $region65: #{vit_block.1} parent=5 // pred_check
      _
    $region66: #{vit_block.1} parent=5 // pred_check_branch
      %365 = sbr.rel (%p362) target = $region68
    $region67: #{vit_block.1} parent=5 // pred_region
      %s366 = ssub.s32 %s18, 1
      %p367 = scmp.lt.s32.totalorder %s23, 1
      %s368 = scalar_select %p367, %s23, 1
      %s369 = smul.addr %s368, 8
      %s370 = scalar_lea.vmem %s0, %s369
      %p371 = pneg %p44
      %p372 = pneg %p41
      %p373 = pneg %p65
      %p374 = pneg %p62
      %p375 = pneg %p86
      %p376 = pneg %p83
      %p377 = pneg %p107
      %p378 = pneg %p104
      %p379 = pneg %p128
      %p380 = pneg %p125
      %p381 = pneg %p149
      %p382 = pneg %p146
      %p383 = pneg %p170
      %p384 = pneg %p167
      %p385 = pneg %p191
      %p386 = pneg %p188
      %p387 = pneg %p212
      %p388 = pneg %p209
      %p389 = pneg %p233
      %p390 = pneg %p230
      %p391 = pneg %p254
      %p392 = pneg %p251
      %p393 = pneg %p275
      %p394 = pneg %p272
      %p395 = pneg %p301
      %p396 = pneg %p298
      %p397 = scmp.lt.s32.totalorder %s23, 1
      %s398 = scalar_select %p397, %s23, 1
      %s399 = smul.addr %s398, 8
      %s400 = scalar_lea.vmem %s12, %s399
      %p401 = scmp.lt.s32.totalorder %s23, 1
      %s402 = scalar_select %p401, %s23, 1
      %s403 = smul.addr %s402, 8
      %s404 = scalar_lea.vmem %s0, %s403
      %p405 = scmp.lt.s32.totalorder %s23, 1
      %s406 = scalar_select %p405, %s23, 1
      %s407 = smul.addr %s406, 8
      %s408 = scalar_lea.vmem %s12, %s407
      %v410 = vld [vmem:[%s404] sm:$0xff]
      %v411 = vld [vmem:[%s1] sm:$0x1]
      %v412 = vld [vmem:[%s2] sm:$0x1]
      %vm413 = vcmask 261120
      %v414 = vsel %vm413, %v410, 0.0
      %415 = vadd.xlane.f32.xlu0 %v414
      %v416 = vpop.xlane.xlu0 %415
      %v417 = vrcp.pop 32.0
      %v418 = vmul.f32 %v416, %v417
      %v419 = vsub.f32 %v410, %v418
      %v420 = vmul.f32 %v419, %v419
      %v421 = vsel %vm413, %v420, 0.0
      %422 = vadd.xlane.f32.xlu0 %v421
      %v423 = vpop.xlane.xlu0 %422
      %v424 = vmul.f32 %v423, %v417
      %v425 = vadd.f32 %v424, 1e-05
      %v426 = vrsqrt.pop %v425
      %v427 = vmul.f32 %v419, %v426
      %v429 = vlaneseq
      %v430 = vshrl.u32 %v429, 7
      %v431 = vsub.s32 0, %v430
      %v432 = vrot.slane %v411, %v431
      %v434 = vmul.f32 %v427, %v432
      %v436 = vlaneseq
      %v437 = vshrl.u32 %v436, 7
      %v438 = vsub.s32 0, %v437
      %v439 = vrot.slane %v412, %v438
      %v441 = vadd.f32 %v434, %v439
      %v442 = vpack.c.bf16 %v441, %v441
      %v443 = vld [vmem:[%s3] sm:$0xf]
      %v444 = vld [vmem:[%s3 + $0x4] sm:$0xf]
      %v445 = vld [vmem:[%s3 + $0x8] sm:$0xf]
      %v446 = vld [vmem:[%s3 + $0xc] sm:$0xf]
      %v451 = vunpack.c.l.b16 %v443
      %v452 = vunpack.c.l.b16 %v444
      %v453 = vunpack.c.l.b16 %v445
      %v454 = vunpack.c.l.b16 %v446
      %v455 = vpack.c.b16 %v452, %v451
      %v456 = vpack.c.b16 %v454, %v453
      %v460 = vsel %vm413, %v442, 0
      %462 = vmatprep.subr.bf16.mxu0 0
      %463 = vmatpush1.bf16.msra.mxu0 %v455
      %464 = vmatprep.subr.bf16.mxu0 0
      %465 = vmatpush1.bf16.msra.mxu0 %v456
      %466 = vmatprep.subr.bf16.mxu0 0
      %467 = vmatpush1.bf16.msra.mxu0 0
      %468 = vmatprep.subr.bf16.mxu0 0
      %469 = vmatpush1.bf16.msra.mxu0 0
      %470 = vmatprep.subr.bf16.mxu0 0
      %471 = vmatpush1.bf16.msra.mxu0 0
      %472 = vmatprep.subr.bf16.mxu0 0
      %473 = vmatpush1.bf16.msra.mxu0 0
      %474 = vmatprep.subr.bf16.mxu0 0
      %475 = vmatpush1.bf16.msra.mxu0 0
      %476 = vmatprep.subr.bf16.mxu0 0
      %477 = vmatpush1.bf16.msra.mxu0 0
      %478 = vmatprep.subr.bf16.mxu0 0
      %479 = vmatpush1.bf16.msra.mxu0 0
      %480 = vmatprep.subr.bf16.mxu0 0
      %481 = vmatpush1.bf16.msra.mxu0 0
      %482 = vmatprep.subr.bf16.mxu0 0
      %483 = vmatpush1.bf16.msra.mxu0 0
      %484 = vmatprep.subr.bf16.mxu0 0
      %485 = vmatpush1.bf16.msra.mxu0 0
      %486 = vmatprep.subr.bf16.mxu0 0
      %487 = vmatpush1.bf16.msra.mxu0 0
      %488 = vmatprep.subr.bf16.mxu0 0
      %489 = vmatpush1.bf16.msra.mxu0 0
      %490 = vmatprep.subr.bf16.mxu0 0
      %491 = vmatpush1.bf16.msra.mxu0 0
      %492 = vmatprep.subr.bf16.mxu0 0
      %493 = vmatpush1.bf16.msra.mxu0 0
      %494 = vmatprep.mubr.bf16.mxu0 0
      %495 = vmatmul.mubr.bf16.gmra.mrb[0].mxu0 %v460
      %v496 = vpop.f32.mrb[0].mxu0
      %v497 = vadd.f32 0.0, %v496
      %v498 = vpop.f32.mrb[0].mxu0
      %v499 = vpop.f32.mrb[0].mxu0
      %v500 = vpop.f32.mrb[0].mxu0
      %501 = vdwg.mxu0
      %v502 = vpack.c.bf16 %v497, %v497
      %vm503 = vcmask 781312
      %504 = vst.msk [vmem:[#allocation2] sm:$0xf] %vm503, %v502
      %v505 = vld [vmem:[#allocation2] sm:$0xf]
      %v507 = vunpack.c.l.b16 %v505
      %v508 = vpack.c.b16 %v507, %v507
      %509 = vrot.lane.b32.xlu0 %v508, 96
      %v510 = vpop.permute.xlu0 %509
      %vm511 = vcmask 31744
      %v513 = vsel %vm511, %v505, 0
      %v516 = vsel %vm511, %v510, 0
      %518 = vmatprep.subr.bf16.mxu0 0
      %519 = vmatpush1.bf16.xpose.msra.mxu0 %v516
      %520 = vmatprep.subr.bf16.mxu0 0
      %521 = vmatpush1.bf16.xpose.msra.mxu0 0
      %522 = vmatprep.subr.bf16.mxu0 0
      %523 = vmatpush1.bf16.xpose.msra.mxu0 0
      %524 = vmatprep.subr.bf16.mxu0 0
      %525 = vmatpush1.bf16.xpose.msra.mxu0 0
      %526 = vmatprep.subr.bf16.mxu0 0
      %527 = vmatpush1.bf16.xpose.msra.mxu0 0
      %528 = vmatprep.subr.bf16.mxu0 0
      %529 = vmatpush1.bf16.xpose.msra.mxu0 0
      %530 = vmatprep.subr.bf16.mxu0 0
      %531 = vmatpush1.bf16.xpose.msra.mxu0 0
      %532 = vmatprep.subr.bf16.mxu0 0
      %533 = vmatpush1.bf16.xpose.msra.mxu0 0
      %534 = vmatprep.subr.bf16.mxu0 0
      %535 = vmatpush1.bf16.xpose.msra.mxu0 0
      %536 = vmatprep.subr.bf16.mxu0 0
      %537 = vmatpush1.bf16.xpose.msra.mxu0 0
      %538 = vmatprep.subr.bf16.mxu0 0
      %539 = vmatpush1.bf16.xpose.msra.mxu0 0
      %540 = vmatprep.subr.bf16.mxu0 0
      %541 = vmatpush1.bf16.xpose.msra.mxu0 0
      %542 = vmatprep.subr.bf16.mxu0 0
      %543 = vmatpush1.bf16.xpose.msra.mxu0 0
      %544 = vmatprep.subr.bf16.mxu0 0
      %545 = vmatpush1.bf16.xpose.msra.mxu0 0
      %546 = vmatprep.subr.bf16.mxu0 0
      %547 = vmatpush1.bf16.xpose.msra.mxu0 0
      %548 = vmatprep.subr.bf16.mxu0 0
      %549 = vmatpush1.bf16.xpose.msra.mxu0 0
      %550 = vmatprep.mubr.bf16.mxu0 0
      %551 = vmatmul.mubr.bf16.gmra.mrb[0].mxu0 %v513
      %v552 = vpop.f32.mrb[0].mxu0
      %v553 = vadd.f32 0.0, %v552
      %v554 = vpop.f32.mrb[0].mxu0
      %v555 = vpop.f32.mrb[0].mxu0
      %v556 = vpop.f32.mrb[0].mxu0
      %557 = vdwg.mxu0
      %vm558 = vcmask 64512
      %v559 = vsel %vm558, %v553, -inf
      %560 = vmax.xlane.f32.xlu0 %v559
      %v561 = vpop.xlane.xlu0 %560
      %v562 = vsub.f32 %v553, %v561
      %v563 = vmul.f32 %v562, 1.442695
      %v564 = vpow.pop %v563
      %v565 = vsel %vm558, %v564, 0.0
      %566 = vadd.xlane.f32.xlu0 %v565
      %v567 = vpop.xlane.xlu0 %566
      %v568 = vrcp.pop %v567
      %v569 = vmul.f32 %v564, %v568
      %v570 = vpack.c.bf16 %v569, %v569
      %571 = vrot.lane.b32.xlu0 %v508, 64
      %v572 = vpop.permute.xlu0 %571
      %v574 = vsel %vm558, %v570, 0
      %vm576 = vcmask 1043456
      %v578 = vsel %vm576, %v572, 0
      %580 = vmatprep.subr.bf16.mxu0 0
      %581 = vmatpush1.bf16.msra.mxu0 %v578
      %582 = vmatprep.subr.bf16.mxu0 0
      %583 = vmatpush1.bf16.msra.mxu0 0
      %584 = vmatprep.subr.bf16.mxu0 0
      %585 = vmatpush1.bf16.msra.mxu0 0
      %586 = vmatprep.subr.bf16.mxu0 0
      %587 = vmatpush1.bf16.msra.mxu0 0
      %588 = vmatprep.subr.bf16.mxu0 0
      %589 = vmatpush1.bf16.msra.mxu0 0
      %590 = vmatprep.subr.bf16.mxu0 0
      %591 = vmatpush1.bf16.msra.mxu0 0
      %592 = vmatprep.subr.bf16.mxu0 0
      %593 = vmatpush1.bf16.msra.mxu0 0
      %594 = vmatprep.subr.bf16.mxu0 0
      %595 = vmatpush1.bf16.msra.mxu0 0
      %596 = vmatprep.subr.bf16.mxu0 0
      %597 = vmatpush1.bf16.msra.mxu0 0
      %598 = vmatprep.subr.bf16.mxu0 0
      %599 = vmatpush1.bf16.msra.mxu0 0
      %600 = vmatprep.subr.bf16.mxu0 0
      %601 = vmatpush1.bf16.msra.mxu0 0
      %602 = vmatprep.subr.bf16.mxu0 0
      %603 = vmatpush1.bf16.msra.mxu0 0
      %604 = vmatprep.subr.bf16.mxu0 0
      %605 = vmatpush1.bf16.msra.mxu0 0
      %606 = vmatprep.subr.bf16.mxu0 0
      %607 = vmatpush1.bf16.msra.mxu0 0
      %608 = vmatprep.subr.bf16.mxu0 0
      %609 = vmatpush1.bf16.msra.mxu0 0
      %610 = vmatprep.subr.bf16.mxu0 0
      %611 = vmatpush1.bf16.msra.mxu0 0
      %612 = vmatprep.mubr.bf16.mxu0 0
      %613 = vmatmul.mubr.bf16.gmra.mrb[0].mxu0 %v574
      %v614 = vpop.f32.mrb[0].mxu0
      %v615 = vadd.f32 0.0, %v614
      %v616 = vpop.f32.mrb[0].mxu0
      %v617 = vpop.f32.mrb[0].mxu0
      %v618 = vpop.f32.mrb[0].mxu0
      %619 = vdwg.mxu0
      %v620 = vpack.c.bf16 %v615, %v615
      %vm621 = vcmask 27648
      %622 = vst.msk [vmem:[#allocation3] sm:$0xf] %vm621, %v620
      %v623 = vld [vmem:[#allocation2] sm:$0xf]
      %v625 = vunpack.c.l.b16 %v623
      %v626 = vpack.c.b16 %v625, %v625
      %627 = vrot.lane.b32.xlu0 %v626, 124
      %v628 = vpop.permute.xlu0 %627
      %629 = vrot.lane.b32.xlu0 %v626, 92
      %v630 = vpop.permute.xlu0 %629
      %v632 = vsel %vm511, %v628, 0
      %v635 = vsel %vm511, %v630, 0
      %637 = vmatprep.subr.bf16.mxu0 0
      %638 = vmatpush1.bf16.xpose.msra.mxu0 %v635
      %639 = vmatprep.subr.bf16.mxu0 0
      %640 = vmatpush1.bf16.xpose.msra.mxu0 0
      %641 = vmatprep.subr.bf16.mxu0 0
      %642 = vmatpush1.bf16.xpose.msra.mxu0 0
      %643 = vmatprep.subr.bf16.mxu0 0
      %644 = vmatpush1.bf16.xpose.msra.mxu0 0
      %645 = vmatprep.subr.bf16.mxu0 0
      %646 = vmatpush1.bf16.xpose.msra.mxu0 0
      %647 = vmatprep.subr.bf16.mxu0 0
      %648 = vmatpush1.bf16.xpose.msra.mxu0 0
      %649 = vmatprep.subr.bf16.mxu0 0
      %650 = vmatpush1.bf16.xpose.msra.mxu0 0
      %651 = vmatprep.subr.bf16.mxu0 0
      %652 = vmatpush1.bf16.xpose.msra.mxu0 0
      %653 = vmatprep.subr.bf16.mxu0 0
      %654 = vmatpush1.bf16.xpose.msra.mxu0 0
      %655 = vmatprep.subr.bf16.mxu0 0
      %656 = vmatpush1.bf16.xpose.msra.mxu0 0
      %657 = vmatprep.subr.bf16.mxu0 0
      %658 = vmatpush1.bf16.xpose.msra.mxu0 0
      %659 = vmatprep.subr.bf16.mxu0 0
      %660 = vmatpush1.bf16.xpose.msra.mxu0 0
      %661 = vmatprep.subr.bf16.mxu0 0
      %662 = vmatpush1.bf16.xpose.msra.mxu0 0
      %663 = vmatprep.subr.bf16.mxu0 0
      %664 = vmatpush1.bf16.xpose.msra.mxu0 0
      %665 = vmatprep.subr.bf16.mxu0 0
      %666 = vmatpush1.bf16.xpose.msra.mxu0 0
      %667 = vmatprep.subr.bf16.mxu0 0
      %668 = vmatpush1.bf16.xpose.msra.mxu0 0
      %669 = vmatprep.mubr.bf16.mxu0 0
      %670 = vmatmul.mubr.bf16.gmra.mrb[0].mxu0 %v632
      %v671 = vpop.f32.mrb[0].mxu0
      %v672 = vadd.f32 0.0, %v671
      %v673 = vpop.f32.mrb[0].mxu0
      %v674 = vpop.f32.mrb[0].mxu0
      %v675 = vpop.f32.mrb[0].mxu0
      %676 = vdwg.mxu0
      %v677 = vsel %vm558, %v672, -inf
      %678 = vmax.xlane.f32.xlu0 %v677
      %v679 = vpop.xlane.xlu0 %678
      %v680 = vsub.f32 %v672, %v679
      %v681 = vmul.f32 %v680, 1.442695
      %v682 = vpow.pop %v681
      %v683 = vsel %vm558, %v682, 0.0
      %684 = vadd.xlane.f32.xlu0 %v683
      %v685 = vpop.xlane.xlu0 %684
      %v686 = vrcp.pop %v685
      %v687 = vmul.f32 %v682, %v686
      %v688 = vpack.c.bf16 %v687, %v687
      %689 = vrot.lane.b32.xlu0 %v626, 60
      %v690 = vpop.permute.xlu0 %689
      %v692 = vsel %vm558, %v688, 0
      %v695 = vsel %vm576, %v690, 0
      %697 = vmatprep.subr.bf16.mxu0 0
      %698 = vmatpush1.bf16.msra.mxu0 %v695
      %699 = vmatprep.subr.bf16.mxu0 0
      %700 = vmatpush1.bf16.msra.mxu0 0
      %701 = vmatprep.subr.bf16.mxu0 0
      %702 = vmatpush1.bf16.msra.mxu0 0
      %703 = vmatprep.subr.bf16.mxu0 0
      %704 = vmatpush1.bf16.msra.mxu0 0
      %705 = vmatprep.subr.bf16.mxu0 0
      %706 = vmatpush1.bf16.msra.mxu0 0
      %707 = vmatprep.subr.bf16.mxu0 0
      %708 = vmatpush1.bf16.msra.mxu0 0
      %709 = vmatprep.subr.bf16.mxu0 0
      %710 = vmatpush1.bf16.msra.mxu0 0
      %711 = vmatprep.subr.bf16.mxu0 0
      %712 = vmatpush1.bf16.msra.mxu0 0
      %713 = vmatprep.subr.bf16.mxu0 0
      %714 = vmatpush1.bf16.msra.mxu0 0
      %715 = vmatprep.subr.bf16.mxu0 0
      %716 = vmatpush1.bf16.msra.mxu0 0
      %717 = vmatprep.subr.bf16.mxu0 0
      %718 = vmatpush1.bf16.msra.mxu0 0
      %719 = vmatprep.subr.bf16.mxu0 0
      %720 = vmatpush1.bf16.msra.mxu0 0
      %721 = vmatprep.subr.bf16.mxu0 0
      %722 = vmatpush1.bf16.msra.mxu0 0
      %723 = vmatprep.subr.bf16.mxu0 0
      %724 = vmatpush1.bf16.msra.mxu0 0
      %725 = vmatprep.subr.bf16.mxu0 0
      %726 = vmatpush1.bf16.msra.mxu0 0
      %727 = vmatprep.subr.bf16.mxu0 0
      %728 = vmatpush1.bf16.msra.mxu0 0
      %729 = vmatprep.mubr.bf16.mxu0 0
      %730 = vmatmul.mubr.bf16.gmra.mrb[0].mxu0 %v692
      %v731 = vpop.f32.mrb[0].mxu0
      %v732 = vadd.f32 0.0, %v731
      %v733 = vpop.f32.mrb[0].mxu0
      %v734 = vpop.f32.mrb[0].mxu0
      %v735 = vpop.f32.mrb[0].mxu0
      %736 = vdwg.mxu0
      %v737 = vpack.c.bf16 %v732, %v732
      %v739 = vunpack.c.l.b16 %v737
      %v740 = vpack.c.b16 %v739, %v739
      %741 = vrot.lane.b32.xlu0 %v740, 4
      %v742 = vpop.permute.xlu0 %741
      %vm744 = vcmask 60448
      %745 = vst.msk [vmem:[#allocation3] sm:$0xf] %vm744, %v742
      %v746 = vld [vmem:[#allocation2] sm:$0xf]
      %v748 = vunpack.c.l.b16 %v746
      %v749 = vpack.c.b16 %v748, %v748
      %750 = vrot.lane.b32.xlu0 %v749, 120
      %v751 = vpop.permute.xlu0 %750
      %752 = vrot.lane.b32.xlu0 %v749, 88
      %v753 = vpop.permute.xlu0 %752
      %v755 = vsel %vm511, %v751, 0
      %v758 = vsel %vm511, %v753, 0
      %760 = vmatprep.subr.bf16.mxu0 0
      %761 = vmatpush1.bf16.xpose.msra.mxu0 %v758
      %762 = vmatprep.subr.bf16.mxu0 0
      %763 = vmatpush1.bf16.xpose.msra.mxu0 0
      %764 = vmatprep.subr.bf16.mxu0 0
      %765 = vmatpush1.bf16.xpose.msra.mxu0 0
      %766 = vmatprep.subr.bf16.mxu0 0
      %767 = vmatpush1.bf16.xpose.msra.mxu0 0
      %768 = vmatprep.subr.bf16.mxu0 0
      %769 = vmatpush1.bf16.xpose.msra.mxu0 0
      %770 = vmatprep.subr.bf16.mxu0 0
      %771 = vmatpush1.bf16.xpose.msra.mxu0 0
      %772 = vmatprep.subr.bf16.mxu0 0
      %773 = vmatpush1.bf16.xpose.msra.mxu0 0
      %774 = vmatprep.subr.bf16.mxu0 0
      %775 = vmatpush1.bf16.xpose.msra.mxu0 0
      %776 = vmatprep.subr.bf16.mxu0 0
      %777 = vmatpush1.bf16.xpose.msra.mxu0 0
      %778 = vmatprep.subr.bf16.mxu0 0
      %779 = vmatpush1.bf16.xpose.msra.mxu0 0
      %780 = vmatprep.subr.bf16.mxu0 0
      %781 = vmatpush1.bf16.xpose.msra.mxu0 0
      %782 = vmatprep.subr.bf16.mxu0 0
      %783 = vmatpush1.bf16.xpose.msra.mxu0 0
      %784 = vmatprep.subr.bf16.mxu0 0
      %785 = vmatpush1.bf16.xpose.msra.mxu0 0
      %786 = vmatprep.subr.bf16.mxu0 0
      %787 = vmatpush1.bf16.xpose.msra.mxu0 0
      %788 = vmatprep.subr.bf16.mxu0 0
      %789 = vmatpush1.bf16.xpose.msra.mxu0 0
      %790 = vmatprep.subr.bf16.mxu0 0
      %791 = vmatpush1.bf16.xpose.msra.mxu0 0
      %792 = vmatprep.mubr.bf16.mxu0 0
      %793 = vmatmul.mubr.bf16.gmra.mrb[0].mxu0 %v755
      %v794 = vpop.f32.mrb[0].mxu0
      %v795 = vadd.f32 0.0, %v794
      %v796 = vpop.f32.mrb[0].mxu0
      %v797 = vpop.f32.mrb[0].mxu0
      %v798 = vpop.f32.mrb[0].mxu0
      %799 = vdwg.mxu0
      %v800 = vsel %vm558, %v795, -inf
      %801 = vmax.xlane.f32.xlu0 %v800
      %v802 = vpop.xlane.xlu0 %801
      %v803 = vsub.f32 %v795, %v802
      %v804 = vmul.f32 %v803, 1.442695
      %v805 = vpow.pop %v804
      %v806 = vsel %vm558, %v805, 0.0
      %807 = vadd.xlane.f32.xlu0 %v806
      %v808 = vpop.xlane.xlu0 %807
      %v809 = vrcp.pop %v808
      %v810 = vmul.f32 %v805, %v809
      %v811 = vpack.c.bf16 %v810, %v810
      %812 = vrot.lane.b32.xlu0 %v749, 56
      %v813 = vpop.permute.xlu0 %812
      %v815 = vsel %vm558, %v811, 0
      %v818 = vsel %vm576, %v813, 0
      %820 = vmatprep.subr.bf16.mxu0 0
      %821 = vmatpush1.bf16.msra.mxu0 %v818
      %822 = vmatprep.subr.bf16.mxu0 0
      %823 = vmatpush1.bf16.msra.mxu0 0
      %824 = vmatprep.subr.bf16.mxu0 0
      %825 = vmatpush1.bf16.msra.mxu0 0
      %826 = vmatprep.subr.bf16.mxu0 0
      %827 = vmatpush1.bf16.msra.mxu0 0
      %828 = vmatprep.subr.bf16.mxu0 0
      %829 = vmatpush1.bf16.msra.mxu0 0
      %830 = vmatprep.subr.bf16.mxu0 0
      %831 = vmatpush1.bf16.msra.mxu0 0
      %832 = vmatprep.subr.bf16.mxu0 0
      %833 = vmatpush1.bf16.msra.mxu0 0
      %834 = vmatprep.subr.bf16.mxu0 0
      %835 = vmatpush1.bf16.msra.mxu0 0
      %836 = vmatprep.subr.bf16.mxu0 0
      %837 = vmatpush1.bf16.msra.mxu0 0
      %838 = vmatprep.subr.bf16.mxu0 0
      %839 = vmatpush1.bf16.msra.mxu0 0
      %840 = vmatprep.subr.bf16.mxu0 0
      %841 = vmatpush1.bf16.msra.mxu0 0
      %842 = vmatprep.subr.bf16.mxu0 0
      %843 = vmatpush1.bf16.msra.mxu0 0
      %844 = vmatprep.subr.bf16.mxu0 0
      %845 = vmatpush1.bf16.msra.mxu0 0
      %846 = vmatprep.subr.bf16.mxu0 0
      %847 = vmatpush1.bf16.msra.mxu0 0
      %848 = vmatprep.subr.bf16.mxu0 0
      %849 = vmatpush1.bf16.msra.mxu0 0
      %850 = vmatprep.subr.bf16.mxu0 0
      %851 = vmatpush1.bf16.msra.mxu0 0
      %852 = vmatprep.mubr.bf16.mxu0 0
      %853 = vmatmul.mubr.bf16.gmra.mrb[0].mxu0 %v815
      %v854 = vpop.f32.mrb[0].mxu0
      %v855 = vadd.f32 0.0, %v854
      %v856 = vpop.f32.mrb[0].mxu0
      %v857 = vpop.f32.mrb[0].mxu0
      %v858 = vpop.f32.mrb[0].mxu0
      %859 = vdwg.mxu0
      %v860 = vpack.c.bf16 %v855, %v855
      %v862 = vunpack.c.l.b16 %v860
      %v863 = vpack.c.b16 %v862, %v862
      %864 = vrot.lane.b32.xlu0 %v863, 8
      %v865 = vpop.permute.xlu0 %864
      %vm867 = vcmask 93248
      %868 = vst.msk [vmem:[#allocation3] sm:$0xf] %vm867, %v865
      %v869 = vld [vmem:[#allocation2] sm:$0xf]
      %v871 = vunpack.c.l.b16 %v869
      %v872 = vpack.c.b16 %v871, %v871
      %873 = vrot.lane.b32.xlu0 %v872, 116
      %v874 = vpop.permute.xlu0 %873
      %875 = vrot.lane.b32.xlu0 %v872, 84
      %v876 = vpop.permute.xlu0 %875
      %v878 = vsel %vm511, %v874, 0
      %v881 = vsel %vm511, %v876, 0
      %883 = vmatprep.subr.bf16.mxu0 0
      %884 = vmatpush1.bf16.xpose.msra.mxu0 %v881
      %885 = vmatprep.subr.bf16.mxu0 0
      %886 = vmatpush1.bf16.xpose.msra.mxu0 0
      %887 = vmatprep.subr.bf16.mxu0 0
      %888 = vmatpush1.bf16.xpose.msra.mxu0 0
      %889 = vmatprep.subr.bf16.mxu0 0
      %890 = vmatpush1.bf16.xpose.msra.mxu0 0
      %891 = vmatprep.subr.bf16.mxu0 0
      %892 = vmatpush1.bf16.xpose.msra.mxu0 0
      %893 = vmatprep.subr.bf16.mxu0 0
      %894 = vmatpush1.bf16.xpose.msra.mxu0 0
      %895 = vmatprep.subr.bf16.mxu0 0
      %896 = vmatpush1.bf16.xpose.msra.mxu0 0
      %897 = vmatprep.subr.bf16.mxu0 0
      %898 = vmatpush1.bf16.xpose.msra.mxu0 0
      %899 = vmatprep.subr.bf16.mxu0 0
      %900 = vmatpush1.bf16.xpose.msra.mxu0 0
      %901 = vmatprep.subr.bf16.mxu0 0
      %902 = vmatpush1.bf16.xpose.msra.mxu0 0
      %903 = vmatprep.subr.bf16.mxu0 0
      %904 = vmatpush1.bf16.xpose.msra.mxu0 0
      %905 = vmatprep.subr.bf16.mxu0 0
      %906 = vmatpush1.bf16.xpose.msra.mxu0 0
      %907 = vmatprep.subr.bf16.mxu0 0
      %908 = vmatpush1.bf16.xpose.msra.mxu0 0
      %909 = vmatprep.subr.bf16.mxu0 0
      %910 = vmatpush1.bf16.xpose.msra.mxu0 0
      %911 = vmatprep.subr.bf16.mxu0 0
      %912 = vmatpush1.bf16.xpose.msra.mxu0 0
      %913 = vmatprep.subr.bf16.mxu0 0
      %914 = vmatpush1.bf16.xpose.msra.mxu0 0
      %915 = vmatprep.mubr.bf16.mxu0 0
      %916 = vmatmul.mubr.bf16.gmra.mrb[0].mxu0 %v878
      %v917 = vpop.f32.mrb[0].mxu0
      %v918 = vadd.f32 0.0, %v917
      %v919 = vpop.f32.mrb[0].mxu0
      %v920 = vpop.f32.mrb[0].mxu0
      %v921 = vpop.f32.mrb[0].mxu0
      %922 = vdwg.mxu0
      %v923 = vsel %vm558, %v918, -inf
      %924 = vmax.xlane.f32.xlu0 %v923
      %v925 = vpop.xlane.xlu0 %924
      %v926 = vsub.f32 %v918, %v925
      %v927 = vmul.f32 %v926, 1.442695
      %v928 = vpow.pop %v927
      %v929 = vsel %vm558, %v928, 0.0
      %930 = vadd.xlane.f32.xlu0 %v929
      %v931 = vpop.xlane.xlu0 %930
      %v932 = vrcp.pop %v931
      %v933 = vmul.f32 %v928, %v932
      %v934 = vpack.c.bf16 %v933, %v933
      %935 = vrot.lane.b32.xlu0 %v872, 52
      %v936 = vpop.permute.xlu0 %935
      %v938 = vsel %vm558, %v934, 0
      %v941 = vsel %vm576, %v936, 0
      %943 = vmatprep.subr.bf16.mxu0 0
      %944 = vmatpush1.bf16.msra.mxu0 %v941
      %945 = vmatprep.subr.bf16.mxu0 0
      %946 = vmatpush1.bf16.msra.mxu0 0
      %947 = vmatprep.subr.bf16.mxu0 0
      %948 = vmatpush1.bf16.msra.mxu0 0
      %949 = vmatprep.subr.bf16.mxu0 0
      %950 = vmatpush1.bf16.msra.mxu0 0
      %951 = vmatprep.subr.bf16.mxu0 0
      %952 = vmatpush1.bf16.msra.mxu0 0
      %953 = vmatprep.subr.bf16.mxu0 0
      %954 = vmatpush1.bf16.msra.mxu0 0
      %955 = vmatprep.subr.bf16.mxu0 0
      %956 = vmatpush1.bf16.msra.mxu0 0
      %957 = vmatprep.subr.bf16.mxu0 0
      %958 = vmatpush1.bf16.msra.mxu0 0
      %959 = vmatprep.subr.bf16.mxu0 0
      %960 = vmatpush1.bf16.msra.mxu0 0
      %961 = vmatprep.subr.bf16.mxu0 0
      %962 = vmatpush1.bf16.msra.mxu0 0
      %963 = vmatprep.subr.bf16.mxu0 0
      %964 = vmatpush1.bf16.msra.mxu0 0
      %965 = vmatprep.subr.bf16.mxu0 0
      %966 = vmatpush1.bf16.msra.mxu0 0
      %967 = vmatprep.subr.bf16.mxu0 0
      %968 = vmatpush1.bf16.msra.mxu0 0
      %969 = vmatprep.subr.bf16.mxu0 0
      %970 = vmatpush1.bf16.msra.mxu0 0
      %971 = vmatprep.subr.bf16.mxu0 0
      %972 = vmatpush1.bf16.msra.mxu0 0
      %973 = vmatprep.subr.bf16.mxu0 0
      %974 = vmatpush1.bf16.msra.mxu0 0
      %975 = vmatprep.mubr.bf16.mxu0 0
      %976 = vmatmul.mubr.bf16.gmra.mrb[0].mxu0 %v938
      %v977 = vpop.f32.mrb[0].mxu0
      %v978 = vadd.f32 0.0, %v977
      %v979 = vpop.f32.mrb[0].mxu0
      %v980 = vpop.f32.mrb[0].mxu0
      %v981 = vpop.f32.mrb[0].mxu0
      %982 = vdwg.mxu0
      %v983 = vpack.c.bf16 %v978, %v978
      %v985 = vunpack.c.l.b16 %v983
      %v986 = vpack.c.b16 %v985, %v985
      %987 = vrot.lane.b32.xlu0 %v986, 12
      %v988 = vpop.permute.xlu0 %987
      %vm990 = vcmask 126048
      %991 = vst.msk [vmem:[#allocation3] sm:$0xf] %vm990, %v988
      %v992 = vld [vmem:[#allocation2] sm:$0xf]
      %v994 = vunpack.c.l.b16 %v992
      %v995 = vpack.c.b16 %v994, %v994
      %996 = vrot.lane.b32.xlu0 %v995, 112
      %v997 = vpop.permute.xlu0 %996
      %998 = vrot.lane.b32.xlu0 %v995, 80
      %v999 = vpop.permute.xlu0 %998
      %v1001 = vsel %vm511, %v997, 0
      %v1004 = vsel %vm511, %v999, 0
      %1006 = vmatprep.subr.bf16.mxu0 0
      %1007 = vmatpush1.bf16.xpose.msra.mxu0 %v1004
      %1008 = vmatprep.subr.bf16.mxu0 0
      %1009 = vmatpush1.bf16.xpose.msra.mxu0 0
      %1010 = vmatprep.subr.bf16.mxu0 0
      %1011 = vmatpush1.bf16.xpose.msra.mxu0 0
      %1012 = vmatprep.subr.bf16.mxu0 0
      %1013 = vmatpush1.bf16.xpose.msra.mxu0 0
      %1014 = vmatprep.subr.bf16.mxu0 0
      %1015 = vmatpush1.bf16.xpose.msra.mxu0 0
      %1016 = vmatprep.subr.bf16.mxu0 0
      %1017 = vmatpush1.bf16.xpose.msra.mxu0 0
      %1018 = vmatprep.subr.bf16.mxu0 0
      %1019 = vmatpush1.bf16.xpose.msra.mxu0 0
      %1020 = vmatprep.subr.bf16.mxu0 0
      %1021 = vmatpush1.bf16.xpose.msra.mxu0 0
      %1022 = vmatprep.subr.bf16.mxu0 0
      %1023 = vmatpush1.bf16.xpose.msra.mxu0 0
      %1024 = vmatprep.subr.bf16.mxu0 0
      %1025 = vmatpush1.bf16.xpose.msra.mxu0 0
      %1026 = vmatprep.subr.bf16.mxu0 0
      %1027 = vmatpush1.bf16.xpose.msra.mxu0 0
      %1028 = vmatprep.subr.bf16.mxu0 0
      %1029 = vmatpush1.bf16.xpose.msra.mxu0 0
      %1030 = vmatprep.subr.bf16.mxu0 0
      %1031 = vmatpush1.bf16.xpose.msra.mxu0 0
      %1032 = vmatprep.subr.bf16.mxu0 0
      %1033 = vmatpush1.bf16.xpose.msra.mxu0 0
      %1034 = vmatprep.subr.bf16.mxu0 0
      %1035 = vmatpush1.bf16.xpose.msra.mxu0 0
      %1036 = vmatprep.subr.bf16.mxu0 0
      %1037 = vmatpush1.bf16.xpose.msra.mxu0 0
      %1038 = vmatprep.mubr.bf16.mxu0 0
      %1039 = vmatmul.mubr.bf16.gmra.mrb[0].mxu0 %v1001
      %v1040 = vpop.f32.mrb[0].mxu0
      %v1041 = vadd.f32 0.0, %v1040
      %v1042 = vpop.f32.mrb[0].mxu0
      %v1043 = vpop.f32.mrb[0].mxu0
      %v1044 = vpop.f32.mrb[0].mxu0
      %1045 = vdwg.mxu0
      %v1046 = vsel %vm558, %v1041, -inf
      %1047 = vmax.xlane.f32.xlu0 %v1046
      %v1048 = vpop.xlane.xlu0 %1047
      %v1049 = vsub.f32 %v1041, %v1048
      %v1050 = vmul.f32 %v1049, 1.442695
      %v1051 = vpow.pop %v1050
      %v1052 = vsel %vm558, %v1051, 0.0
      %1053 = vadd.xlane.f32.xlu0 %v1052
      %v1054 = vpop.xlane.xlu0 %1053
      %v1055 = vrcp.pop %v1054
      %v1056 = vmul.f32 %v1051, %v1055
      %v1057 = vpack.c.bf16 %v1056, %v1056
      %1058 = vrot.lane.b32.xlu0 %v995, 48
      %v1059 = vpop.permute.xlu0 %1058
      %v1061 = vsel %vm558, %v1057, 0
      %v1064 = vsel %vm576, %v1059, 0
      %1066 = vmatprep.subr.bf16.mxu0 0
      %1067 = vmatpush1.bf16.msra.mxu0 %v1064
      %1068 = vmatprep.subr.bf16.mxu0 0
      %1069 = vmatpush1.bf16.msra.mxu0 0
      %1070 = vmatprep.subr.bf16.mxu0 0
      %1071 = vmatpush1.bf16.msra.mxu0 0
      %1072 = vmatprep.subr.bf16.mxu0 0
      %1073 = vmatpush1.bf16.msra.mxu0 0
      %1074 = vmatprep.subr.bf16.mxu0 0
      %1075 = vmatpush1.bf16.msra.mxu0 0
      %1076 = vmatprep.subr.bf16.mxu0 0
      %1077 = vmatpush1.bf16.msra.mxu0 0
      %1078 = vmatprep.subr.bf16.mxu0 0
      %1079 = vmatpush1.bf16.msra.mxu0 0
      %1080 = vmatprep.subr.bf16.mxu0 0
      %1081 = vmatpush1.bf16.msra.mxu0 0
      %1082 = vmatprep.subr.bf16.mxu0 0
      %1083 = vmatpush1.bf16.msra.mxu0 0
      %1084 = vmatprep.subr.bf16.mxu0 0
      %1085 = vmatpush1.bf16.msra.mxu0 0
      %1086 = vmatprep.subr.bf16.mxu0 0
      %1087 = vmatpush1.bf16.msra.mxu0 0
      %1088 = vmatprep.subr.bf16.mxu0 0
      %1089 = vmatpush1.bf16.msra.mxu0 0
      %1090 = vmatprep.subr.bf16.mxu0 0
      %1091 = vmatpush1.bf16.msra.mxu0 0
      %1092 = vmatprep.subr.bf16.mxu0 0
      %1093 = vmatpush1.bf16.msra.mxu0 0
      %1094 = vmatprep.subr.bf16.mxu0 0
      %1095 = vmatpush1.bf16.msra.mxu0 0
      %1096 = vmatprep.subr.bf16.mxu0 0
      %1097 = vmatpush1.bf16.msra.mxu0 0
      %1098 = vmatprep.mubr.bf16.mxu0 0
      %1099 = vmatmul.mubr.bf16.gmra.mrb[0].mxu0 %v1061
      %v1100 = vpop.f32.mrb[0].mxu0
      %v1101 = vadd.f32 0.0, %v1100
      %v1102 = vpop.f32.mrb[0].mxu0
      %v1103 = vpop.f32.mrb[0].mxu0
      %v1104 = vpop.f32.mrb[0].mxu0
      %1105 = vdwg.mxu0
      %v1106 = vpack.c.bf16 %v1101, %v1101
      %v1108 = vunpack.c.l.b16 %v1106
      %v1109 = vpack.c.b16 %v1108, %v1108
      %1110 = vrot.lane.b32.xlu0 %v1109, 16
      %v1111 = vpop.permute.xlu0 %1110
      %vm1113 = vcmask 158848
      %1114 = vst.msk [vmem:[#allocation3] sm:$0xf] %vm1113, %v1111
      %v1115 = vld [vmem:[#allocation2] sm:$0xf]
      %v1117 = vunpack.c.l.b16 %v1115
      %v1118 = vpack.c.b16 %v1117, %v1117
      %1119 = vrot.lane.b32.xlu0 %v1118, 108
      %v1120 = vpop.permute.xlu0 %1119
      %1121 = vrot.lane.b32.xlu0 %v1118, 76
      %v1122 = vpop.permute.xlu0 %1121
      %v1124 = vsel %vm511, %v1120, 0
      %v1127 = vsel %vm511, %v1122, 0
      %1129 = vmatprep.subr.bf16.mxu0 0
      %1130 = vmatpush1.bf16.xpose.msra.mxu0 %v1127
      %1131 = vmatprep.subr.bf16.mxu0 0
      %1132 = vmatpush1.bf16.xpose.msra.mxu0 0
      %1133 = vmatprep.subr.bf16.mxu0 0
      %1134 = vmatpush1.bf16.xpose.msra.mxu0 0
      %1135 = vmatprep.subr.bf16.mxu0 0
      %1136 = vmatpush1.bf16.xpose.msra.mxu0 0
      %1137 = vmatprep.subr.bf16.mxu0 0
      %1138 = vmatpush1.bf16.xpose.msra.mxu0 0
      %1139 = vmatprep.subr.bf16.mxu0 0
      %1140 = vmatpush1.bf16.xpose.msra.mxu0 0
      %1141 = vmatprep.subr.bf16.mxu0 0
      %1142 = vmatpush1.bf16.xpose.msra.mxu0 0
      %1143 = vmatprep.subr.bf16.mxu0 0
      %1144 = vmatpush1.bf16.xpose.msra.mxu0 0
      %1145 = vmatprep.subr.bf16.mxu0 0
      %1146 = vmatpush1.bf16.xpose.msra.mxu0 0
      %1147 = vmatprep.subr.bf16.mxu0 0
      %1148 = vmatpush1.bf16.xpose.msra.mxu0 0
      %1149 = vmatprep.subr.bf16.mxu0 0
      %1150 = vmatpush1.bf16.xpose.msra.mxu0 0
      %1151 = vmatprep.subr.bf16.mxu0 0
      %1152 = vmatpush1.bf16.xpose.msra.mxu0 0
      %1153 = vmatprep.subr.bf16.mxu0 0
      %1154 = vmatpush1.bf16.xpose.msra.mxu0 0
      %1155 = vmatprep.subr.bf16.mxu0 0
      %1156 = vmatpush1.bf16.xpose.msra.mxu0 0
      %1157 = vmatprep.subr.bf16.mxu0 0
      %1158 = vmatpush1.bf16.xpose.msra.mxu0 0
      %1159 = vmatprep.subr.bf16.mxu0 0
      %1160 = vmatpush1.bf16.xpose.msra.mxu0 0
      %1161 = vmatprep.mubr.bf16.mxu0 0
      %1162 = vmatmul.mubr.bf16.gmra.mrb[0].mxu0 %v1124
      %v1163 = vpop.f32.mrb[0].mxu0
      %v1164 = vadd.f32 0.0, %v1163
      %v1165 = vpop.f32.mrb[0].mxu0
      %v1166 = vpop.f32.mrb[0].mxu0
      %v1167 = vpop.f32.mrb[0].mxu0
      %1168 = vdwg.mxu0
      %v1169 = vsel %vm558, %v1164, -inf
      %1170 = vmax.xlane.f32.xlu0 %v1169
      %v1171 = vpop.xlane.xlu0 %1170
      %v1172 = vsub.f32 %v1164, %v1171
      %v1173 = vmul.f32 %v1172, 1.442695
      %v1174 = vpow.pop %v1173
      %v1175 = vsel %vm558, %v1174, 0.0
      %1176 = vadd.xlane.f32.xlu0 %v1175
      %v1177 = vpop.xlane.xlu0 %1176
      %v1178 = vrcp.pop %v1177
      %v1179 = vmul.f32 %v1174, %v1178
      %v1180 = vpack.c.bf16 %v1179, %v1179
      %1181 = vrot.lane.b32.xlu0 %v1118, 44
      %v1182 = vpop.permute.xlu0 %1181
      %v1184 = vsel %vm558, %v1180, 0
      %v1187 = vsel %vm576, %v1182, 0
      %1189 = vmatprep.subr.bf16.mxu0 0
      %1190 = vmatpush1.bf16.msra.mxu0 %v1187
      %1191 = vmatprep.subr.bf16.mxu0 0
      %1192 = vmatpush1.bf16.msra.mxu0 0
      %1193 = vmatprep.subr.bf16.mxu0 0
      %1194 = vmatpush1.bf16.msra.mxu0 0
      %1195 = vmatprep.subr.bf16.mxu0 0
      %1196 = vmatpush1.bf16.msra.mxu0 0
      %1197 = vmatprep.subr.bf16.mxu0 0
      %1198 = vmatpush1.bf16.msra.mxu0 0
      %1199 = vmatprep.subr.bf16.mxu0 0
      %1200 = vmatpush1.bf16.msra.mxu0 0
      %1201 = vmatprep.subr.bf16.mxu0 0
      %1202 = vmatpush1.bf16.msra.mxu0 0
      %1203 = vmatprep.subr.bf16.mxu0 0
      %1204 = vmatpush1.bf16.msra.mxu0 0
      %1205 = vmatprep.subr.bf16.mxu0 0
      %1206 = vmatpush1.bf16.msra.mxu0 0
      %1207 = vmatprep.subr.bf16.mxu0 0
      %1208 = vmatpush1.bf16.msra.mxu0 0
      %1209 = vmatprep.subr.bf16.mxu0 0
      %1210 = vmatpush1.bf16.msra.mxu0 0
      %1211 = vmatprep.subr.bf16.mxu0 0
      %1212 = vmatpush1.bf16.msra.mxu0 0
      %1213 = vmatprep.subr.bf16.mxu0 0
      %1214 = vmatpush1.bf16.msra.mxu0 0
      %1215 = vmatprep.subr.bf16.mxu0 0
      %1216 = vmatpush1.bf16.msra.mxu0 0
      %1217 = vmatprep.subr.bf16.mxu0 0
      %1218 = vmatpush1.bf16.msra.mxu0 0
      %1219 = vmatprep.subr.bf16.mxu0 0
      %1220 = vmatpush1.bf16.msra.mxu0 0
      %1221 = vmatprep.mubr.bf16.mxu0 0
      %1222 = vmatmul.mubr.bf16.gmra.mrb[0].mxu0 %v1184
      %v1223 = vpop.f32.mrb[0].mxu0
      %v1224 = vadd.f32 0.0, %v1223
      %v1225 = vpop.f32.mrb[0].mxu0
      %v1226 = vpop.f32.mrb[0].mxu0
      %v1227 = vpop.f32.mrb[0].mxu0
      %1228 = vdwg.mxu0
      %v1229 = vpack.c.bf16 %v1224, %v1224
      %v1231 = vunpack.c.l.b16 %v1229
      %v1232 = vpack.c.b16 %v1231, %v1231
      %1233 = vrot.lane.b32.xlu0 %v1232, 20
      %v1234 = vpop.permute.xlu0 %1233
      %vm1236 = vcmask 191648
      %1237 = vst.msk [vmem:[#allocation3] sm:$0xf] %vm1236, %v1234
      %v1238 = vld [vmem:[#allocation2] sm:$0xf]
      %v1240 = vunpack.c.l.b16 %v1238
      %v1241 = vpack.c.b16 %v1240, %v1240
      %1242 = vrot.lane.b32.xlu0 %v1241, 104
      %v1243 = vpop.permute.xlu0 %1242
      %1244 = vrot.lane.b32.xlu0 %v1241, 72
      %v1245 = vpop.permute.xlu0 %1244
      %v1247 = vsel %vm511, %v1243, 0
      %v1250 = vsel %vm511, %v1245, 0
      %1252 = vmatprep.subr.bf16.mxu0 0
      %1253 = vmatpush1.bf16.xpose.msra.mxu0 %v1250
      %1254 = vmatprep.subr.bf16.mxu0 0
      %1255 = vmatpush1.bf16.xpose.msra.mxu0 0
      %1256 = vmatprep.subr.bf16.mxu0 0
      %1257 = vmatpush1.bf16.xpose.msra.mxu0 0
      %1258 = vmatprep.subr.bf16.mxu0 0
      %1259 = vmatpush1.bf16.xpose.msra.mxu0 0
      %1260 = vmatprep.subr.bf16.mxu0 0
      %1261 = vmatpush1.bf16.xpose.msra.mxu0 0
      %1262 = vmatprep.subr.bf16.mxu0 0
      %1263 = vmatpush1.bf16.xpose.msra.mxu0 0
      %1264 = vmatprep.subr.bf16.mxu0 0
      %1265 = vmatpush1.bf16.xpose.msra.mxu0 0
      %1266 = vmatprep.subr.bf16.mxu0 0
      %1267 = vmatpush1.bf16.xpose.msra.mxu0 0
      %1268 = vmatprep.subr.bf16.mxu0 0
      %1269 = vmatpush1.bf16.xpose.msra.mxu0 0
      %1270 = vmatprep.subr.bf16.mxu0 0
      %1271 = vmatpush1.bf16.xpose.msra.mxu0 0
      %1272 = vmatprep.subr.bf16.mxu0 0
      %1273 = vmatpush1.bf16.xpose.msra.mxu0 0
      %1274 = vmatprep.subr.bf16.mxu0 0
      %1275 = vmatpush1.bf16.xpose.msra.mxu0 0
      %1276 = vmatprep.subr.bf16.mxu0 0
      %1277 = vmatpush1.bf16.xpose.msra.mxu0 0
      %1278 = vmatprep.subr.bf16.mxu0 0
      %1279 = vmatpush1.bf16.xpose.msra.mxu0 0
      %1280 = vmatprep.subr.bf16.mxu0 0
      %1281 = vmatpush1.bf16.xpose.msra.mxu0 0
      %1282 = vmatprep.subr.bf16.mxu0 0
      %1283 = vmatpush1.bf16.xpose.msra.mxu0 0
      %1284 = vmatprep.mubr.bf16.mxu0 0
      %1285 = vmatmul.mubr.bf16.gmra.mrb[0].mxu0 %v1247
      %v1286 = vpop.f32.mrb[0].mxu0
      %v1287 = vadd.f32 0.0, %v1286
      %v1288 = vpop.f32.mrb[0].mxu0
      %v1289 = vpop.f32.mrb[0].mxu0
      %v1290 = vpop.f32.mrb[0].mxu0
      %1291 = vdwg.mxu0
      %v1292 = vsel %vm558, %v1287, -inf
      %1293 = vmax.xlane.f32.xlu0 %v1292
      %v1294 = vpop.xlane.xlu0 %1293
      %v1295 = vsub.f32 %v1287, %v1294
      %v1296 = vmul.f32 %v1295, 1.442695
      %v1297 = vpow.pop %v1296
      %v1298 = vsel %vm558, %v1297, 0.0
      %1299 = vadd.xlane.f32.xlu0 %v1298
      %v1300 = vpop.xlane.xlu0 %1299
      %v1301 = vrcp.pop %v1300
      %v1302 = vmul.f32 %v1297, %v1301
      %v1303 = vpack.c.bf16 %v1302, %v1302
      %1304 = vrot.lane.b32.xlu0 %v1241, 40
      %v1305 = vpop.permute.xlu0 %1304
      %v1307 = vsel %vm558, %v1303, 0
      %v1310 = vsel %vm576, %v1305, 0
      %1312 = vmatprep.subr.bf16.mxu0 0
      %1313 = vmatpush1.bf16.msra.mxu0 %v1310
      %1314 = vmatprep.subr.bf16.mxu0 0
      %1315 = vmatpush1.bf16.msra.mxu0 0
      %1316 = vmatprep.subr.bf16.mxu0 0
      %1317 = vmatpush1.bf16.msra.mxu0 0
      %1318 = vmatprep.subr.bf16.mxu0 0
      %1319 = vmatpush1.bf16.msra.mxu0 0
      %1320 = vmatprep.subr.bf16.mxu0 0
      %1321 = vmatpush1.bf16.msra.mxu0 0
      %1322 = vmatprep.subr.bf16.mxu0 0
      %1323 = vmatpush1.bf16.msra.mxu0 0
      %1324 = vmatprep.subr.bf16.mxu0 0
      %1325 = vmatpush1.bf16.msra.mxu0 0
      %1326 = vmatprep.subr.bf16.mxu0 0
      %1327 = vmatpush1.bf16.msra.mxu0 0
      %1328 = vmatprep.subr.bf16.mxu0 0
      %1329 = vmatpush1.bf16.msra.mxu0 0
      %1330 = vmatprep.subr.bf16.mxu0 0
      %1331 = vmatpush1.bf16.msra.mxu0 0
      %1332 = vmatprep.subr.bf16.mxu0 0
      %1333 = vmatpush1.bf16.msra.mxu0 0
      %1334 = vmatprep.subr.bf16.mxu0 0
      %1335 = vmatpush1.bf16.msra.mxu0 0
      %1336 = vmatprep.subr.bf16.mxu0 0
      %1337 = vmatpush1.bf16.msra.mxu0 0
      %1338 = vmatprep.subr.bf16.mxu0 0
      %1339 = vmatpush1.bf16.msra.mxu0 0
      %1340 = vmatprep.subr.bf16.mxu0 0
      %1341 = vmatpush1.bf16.msra.mxu0 0
      %1342 = vmatprep.subr.bf16.mxu0 0
      %1343 = vmatpush1.bf16.msra.mxu0 0
      %1344 = vmatprep.mubr.bf16.mxu0 0
      %1345 = vmatmul.mubr.bf16.gmra.mrb[0].mxu0 %v1307
      %v1346 = vpop.f32.mrb[0].mxu0
      %v1347 = vadd.f32 0.0, %v1346
      %v1348 = vpop.f32.mrb[0].mxu0
      %v1349 = vpop.f32.mrb[0].mxu0
      %v1350 = vpop.f32.mrb[0].mxu0
      %1351 = vdwg.mxu0
      %v1352 = vpack.c.bf16 %v1347, %v1347
      %v1354 = vunpack.c.l.b16 %v1352
      %v1355 = vpack.c.b16 %v1354, %v1354
      %1356 = vrot.lane.b32.xlu0 %v1355, 24
      %v1357 = vpop.permute.xlu0 %1356
      %vm1359 = vcmask 224448
      %1360 = vst.msk [vmem:[#allocation3] sm:$0xf] %vm1359, %v1357
      %v1361 = vld [vmem:[#allocation2] sm:$0xf]
      %v1363 = vunpack.c.l.b16 %v1361
      %v1364 = vpack.c.b16 %v1363, %v1363
      %1365 = vrot.lane.b32.xlu0 %v1364, 100
      %v1366 = vpop.permute.xlu0 %1365
      %1367 = vrot.lane.b32.xlu0 %v1364, 68
      %v1368 = vpop.permute.xlu0 %1367
      %v1370 = vsel %vm511, %v1366, 0
      %v1373 = vsel %vm511, %v1368, 0
      %1375 = vmatprep.subr.bf16.mxu0 0
      %1376 = vmatpush1.bf16.xpose.msra.mxu0 %v1373
      %1377 = vmatprep.subr.bf16.mxu0 0
      %1378 = vmatpush1.bf16.xpose.msra.mxu0 0
      %1379 = vmatprep.subr.bf16.mxu0 0
      %1380 = vmatpush1.bf16.xpose.msra.mxu0 0
      %1381 = vmatprep.subr.bf16.mxu0 0
      %1382 = vmatpush1.bf16.xpose.msra.mxu0 0
      %1383 = vmatprep.subr.bf16.mxu0 0
      %1384 = vmatpush1.bf16.xpose.msra.mxu0 0
      %1385 = vmatprep.subr.bf16.mxu0 0
      %1386 = vmatpush1.bf16.xpose.msra.mxu0 0
      %1387 = vmatprep.subr.bf16.mxu0 0
      %1388 = vmatpush1.bf16.xpose.msra.mxu0 0
      %1389 = vmatprep.subr.bf16.mxu0 0
      %1390 = vmatpush1.bf16.xpose.msra.mxu0 0
      %1391 = vmatprep.subr.bf16.mxu0 0
      %1392 = vmatpush1.bf16.xpose.msra.mxu0 0
      %1393 = vmatprep.subr.bf16.mxu0 0
      %1394 = vmatpush1.bf16.xpose.msra.mxu0 0
      %1395 = vmatprep.subr.bf16.mxu0 0
      %1396 = vmatpush1.bf16.xpose.msra.mxu0 0
      %1397 = vmatprep.subr.bf16.mxu0 0
      %1398 = vmatpush1.bf16.xpose.msra.mxu0 0
      %1399 = vmatprep.subr.bf16.mxu0 0
      %1400 = vmatpush1.bf16.xpose.msra.mxu0 0
      %1401 = vmatprep.subr.bf16.mxu0 0
      %1402 = vmatpush1.bf16.xpose.msra.mxu0 0
      %1403 = vmatprep.subr.bf16.mxu0 0
      %1404 = vmatpush1.bf16.xpose.msra.mxu0 0
      %1405 = vmatprep.subr.bf16.mxu0 0
      %1406 = vmatpush1.bf16.xpose.msra.mxu0 0
      %1407 = vmatprep.mubr.bf16.mxu0 0
      %1408 = vmatmul.mubr.bf16.gmra.mrb[0].mxu0 %v1370
      %v1409 = vpop.f32.mrb[0].mxu0
      %v1410 = vadd.f32 0.0, %v1409
      %v1411 = vpop.f32.mrb[0].mxu0
      %v1412 = vpop.f32.mrb[0].mxu0
      %v1413 = vpop.f32.mrb[0].mxu0
      %1414 = vdwg.mxu0
      %v1415 = vsel %vm558, %v1410, -inf
      %1416 = vmax.xlane.f32.xlu0 %v1415
      %v1417 = vpop.xlane.xlu0 %1416
      %v1418 = vsub.f32 %v1410, %v1417
      %v1419 = vmul.f32 %v1418, 1.442695
      %v1420 = vpow.pop %v1419
      %v1421 = vsel %vm558, %v1420, 0.0
      %1422 = vadd.xlane.f32.xlu0 %v1421
      %v1423 = vpop.xlane.xlu0 %1422
      %v1424 = vrcp.pop %v1423
      %v1425 = vmul.f32 %v1420, %v1424
      %v1426 = vpack.c.bf16 %v1425, %v1425
      %1427 = vrot.lane.b32.xlu0 %v1364, 36
      %v1428 = vpop.permute.xlu0 %1427
      %v1430 = vsel %vm558, %v1426, 0
      %v1433 = vsel %vm576, %v1428, 0
      %1435 = vmatprep.subr.bf16.mxu0 0
      %1436 = vmatpush1.bf16.msra.mxu0 %v1433
      %1437 = vmatprep.subr.bf16.mxu0 0
      %1438 = vmatpush1.bf16.msra.mxu0 0
      %1439 = vmatprep.subr.bf16.mxu0 0
      %1440 = vmatpush1.bf16.msra.mxu0 0
      %1441 = vmatprep.subr.bf16.mxu0 0
      %1442 = vmatpush1.bf16.msra.mxu0 0
      %1443 = vmatprep.subr.bf16.mxu0 0
      %1444 = vmatpush1.bf16.msra.mxu0 0
      %1445 = vmatprep.subr.bf16.mxu0 0
      %1446 = vmatpush1.bf16.msra.mxu0 0
      %1447 = vmatprep.subr.bf16.mxu0 0
      %1448 = vmatpush1.bf16.msra.mxu0 0
      %1449 = vmatprep.subr.bf16.mxu0 0
      %1450 = vmatpush1.bf16.msra.mxu0 0
      %1451 = vmatprep.subr.bf16.mxu0 0
      %1452 = vmatpush1.bf16.msra.mxu0 0
      %1453 = vmatprep.subr.bf16.mxu0 0
      %1454 = vmatpush1.bf16.msra.mxu0 0
      %1455 = vmatprep.subr.bf16.mxu0 0
      %1456 = vmatpush1.bf16.msra.mxu0 0
      %1457 = vmatprep.subr.bf16.mxu0 0
      %1458 = vmatpush1.bf16.msra.mxu0 0
      %1459 = vmatprep.subr.bf16.mxu0 0
      %1460 = vmatpush1.bf16.msra.mxu0 0
      %1461 = vmatprep.subr.bf16.mxu0 0
      %1462 = vmatpush1.bf16.msra.mxu0 0
      %1463 = vmatprep.subr.bf16.mxu0 0
      %1464 = vmatpush1.bf16.msra.mxu0 0
      %1465 = vmatprep.subr.bf16.mxu0 0
      %1466 = vmatpush1.bf16.msra.mxu0 0
      %1467 = vmatprep.mubr.bf16.mxu0 0
      %1468 = vmatmul.mubr.bf16.gmra.mrb[0].mxu0 %v1430
      %v1469 = vpop.f32.mrb[0].mxu0
      %v1470 = vadd.f32 0.0, %v1469
      %v1471 = vpop.f32.mrb[0].mxu0
      %v1472 = vpop.f32.mrb[0].mxu0
      %v1473 = vpop.f32.mrb[0].mxu0
      %1474 = vdwg.mxu0
      %v1475 = vpack.c.bf16 %v1470, %v1470
      %v1477 = vunpack.c.l.b16 %v1475
      %v1478 = vpack.c.b16 %v1477, %v1477
      %1479 = vrot.lane.b32.xlu0 %v1478, 28
      %v1480 = vpop.permute.xlu0 %1479
      %vm1482 = vcmask 257248
      %1483 = vst.msk [vmem:[#allocation3] sm:$0xf] %vm1482, %v1480
      %v1484 = vld [vmem:[#allocation3] sm:$0xf]
      %v1485 = vld [vmem:[%s4] sm:$0xf]
      %v1486 = vld [vmem:[%s4 + $0x4] sm:$0xf]
      %v1487 = vld [vmem:[%s4 + $0x8] sm:$0xf]
      %v1488 = vld [vmem:[%s4 + $0xc] sm:$0xf]
      %v1493 = vunpack.c.l.b16 %v1485
      %v1494 = vunpack.c.l.b16 %v1486
      %v1495 = vunpack.c.l.b16 %v1487
      %v1496 = vunpack.c.l.b16 %v1488
      %v1497 = vpack.c.b16 %v1494, %v1493
      %v1498 = vpack.c.b16 %v1496, %v1495
      %v1502 = vsel %vm413, %v1484, 0
      %1504 = vmatprep.subr.bf16.mxu0 0
      %1505 = vmatpush1.bf16.msra.mxu0 %v1497
      %1506 = vmatprep.subr.bf16.mxu0 0
      %1507 = vmatpush1.bf16.msra.mxu0 %v1498
      %1508 = vmatprep.subr.bf16.mxu0 0
      %1509 = vmatpush1.bf16.msra.mxu0 0
      %1510 = vmatprep.subr.bf16.mxu0 0
      %1511 = vmatpush1.bf16.msra.mxu0 0
      %1512 = vmatprep.subr.bf16.mxu0 0
      %1513 = vmatpush1.bf16.msra.mxu0 0
      %1514 = vmatprep.subr.bf16.mxu0 0
      %1515 = vmatpush1.bf16.msra.mxu0 0
      %1516 = vmatprep.subr.bf16.mxu0 0
      %1517 = vmatpush1.bf16.msra.mxu0 0
      %1518 = vmatprep.subr.bf16.mxu0 0
      %1519 = vmatpush1.bf16.msra.mxu0 0
      %1520 = vmatprep.subr.bf16.mxu0 0
      %1521 = vmatpush1.bf16.msra.mxu0 0
      %1522 = vmatprep.subr.bf16.mxu0 0
      %1523 = vmatpush1.bf16.msra.mxu0 0
      %1524 = vmatprep.subr.bf16.mxu0 0
      %1525 = vmatpush1.bf16.msra.mxu0 0
      %1526 = vmatprep.subr.bf16.mxu0 0
      %1527 = vmatpush1.bf16.msra.mxu0 0
      %1528 = vmatprep.subr.bf16.mxu0 0
      %1529 = vmatpush1.bf16.msra.mxu0 0
      %1530 = vmatprep.subr.bf16.mxu0 0
      %1531 = vmatpush1.bf16.msra.mxu0 0
      %1532 = vmatprep.subr.bf16.mxu0 0
      %1533 = vmatpush1.bf16.msra.mxu0 0
      %1534 = vmatprep.subr.bf16.mxu0 0
      %1535 = vmatpush1.bf16.msra.mxu0 0
      %1536 = vmatprep.mubr.bf16.mxu0 0
      %1537 = vmatmul.mubr.bf16.gmra.mrb[0].mxu0 %v1502
      %v1538 = vpop.f32.mrb[0].mxu0
      %v1539 = vadd.f32 0.0, %v1538
      %v1540 = vpop.f32.mrb[0].mxu0
      %v1541 = vpop.f32.mrb[0].mxu0
      %v1542 = vpop.f32.mrb[0].mxu0
      %1543 = vdwg.mxu0
      %v1544 = vadd.f32 %v410, %v1539
      %v1545 = vld [vmem:[%s5] sm:$0x1]
      %v1547 = vlaneseq
      %v1548 = vshrl.u32 %v1547, 7
      %v1549 = vsub.s32 0, %v1548
      %v1550 = vrot.slane %v1545, %v1549
      %v1552 = vadd.f32 %v1544, %v1550
      %v1553 = vld [vmem:[%s6] sm:$0x1]
      %v1554 = vld [vmem:[%s7] sm:$0x1]
      %v1555 = vsel %vm413, %v1552, 0.0
      %1556 = vadd.xlane.f32.xlu0 %v1555
      %v1557 = vpop.xlane.xlu0 %1556
      %v1558 = vmul.f32 %v1557, %v417
      %v1559 = vsub.f32 %v1552, %v1558
      %v1560 = vmul.f32 %v1559, %v1559
      %v1561 = vsel %vm413, %v1560, 0.0
      %1562 = vadd.xlane.f32.xlu0 %v1561
      %v1563 = vpop.xlane.xlu0 %1562
      %v1564 = vmul.f32 %v1563, %v417
      %v1565 = vadd.f32 %v1564, 1e-05
      %v1566 = vrsqrt.pop %v1565
      %v1567 = vmul.f32 %v1559, %v1566
      %v1569 = vlaneseq
      %v1570 = vshrl.u32 %v1569, 7
      %v1571 = vsub.s32 0, %v1570
      %v1572 = vrot.slane %v1553, %v1571
      %v1574 = vmul.f32 %v1567, %v1572
      %v1576 = vlaneseq
      %v1577 = vshrl.u32 %v1576, 7
      %v1578 = vsub.s32 0, %v1577
      %v1579 = vrot.slane %v1554, %v1578
      %v1581 = vadd.f32 %v1574, %v1579
      %v1582 = vpack.c.bf16 %v1581, %v1581
      %v1583 = vld [vmem:[%s8] sm:$0xf]
      %v1584 = vld [vmem:[%s8 + $0x4] sm:$0xf]
      %v1585 = vld [vmem:[%s8 + $0x8] sm:$0xf]
      %v1586 = vld [vmem:[%s8 + $0xc] sm:$0xf]
      %v1587 = vld [vmem:[%s9] sm:$0x1]
      %v1589 = vlaneseq
      %v1590 = vshrl.u32 %v1589, 7
      %v1591 = vsub.s32 0, %v1590
      %v1592 = vrot.slane %v1587, %v1591
      %v1598 = vunpack.c.l.b16 %v1583
      %v1599 = vunpack.c.l.b16 %v1584
      %v1600 = vunpack.c.l.b16 %v1585
      %v1601 = vunpack.c.l.b16 %v1586
      %v1602 = vpack.c.b16 %v1599, %v1598
      %v1603 = vpack.c.b16 %v1601, %v1600
      %v1607 = vsel %vm413, %v1582, 0
      %1609 = vmatprep.subr.bf16.mxu0 0
      %1610 = vmatpush1.bf16.msra.mxu0 %v1602
      %1611 = vmatprep.subr.bf16.mxu0 0
      %1612 = vmatpush1.bf16.msra.mxu0 %v1603
      %1613 = vmatprep.subr.bf16.mxu0 0
      %1614 = vmatpush1.bf16.msra.mxu0 0
      %1615 = vmatprep.subr.bf16.mxu0 0
      %1616 = vmatpush1.bf16.msra.mxu0 0
      %1617 = vmatprep.subr.bf16.mxu0 0
      %1618 = vmatpush1.bf16.msra.mxu0 0
      %1619 = vmatprep.subr.bf16.mxu0 0
      %1620 = vmatpush1.bf16.msra.mxu0 0
      %1621 = vmatprep.subr.bf16.mxu0 0
      %1622 = vmatpush1.bf16.msra.mxu0 0
      %1623 = vmatprep.subr.bf16.mxu0 0
      %1624 = vmatpush1.bf16.msra.mxu0 0
      %1625 = vmatprep.subr.bf16.mxu0 0
      %1626 = vmatpush1.bf16.msra.mxu0 0
      %1627 = vmatprep.subr.bf16.mxu0 0
      %1628 = vmatpush1.bf16.msra.mxu0 0
      %1629 = vmatprep.subr.bf16.mxu0 0
      %1630 = vmatpush1.bf16.msra.mxu0 0
      %1631 = vmatprep.subr.bf16.mxu0 0
      %1632 = vmatpush1.bf16.msra.mxu0 0
      %1633 = vmatprep.subr.bf16.mxu0 0
      %1634 = vmatpush1.bf16.msra.mxu0 0
      %1635 = vmatprep.subr.bf16.mxu0 0
      %1636 = vmatpush1.bf16.msra.mxu0 0
      %1637 = vmatprep.subr.bf16.mxu0 0
      %1638 = vmatpush1.bf16.msra.mxu0 0
      %1639 = vmatprep.subr.bf16.mxu0 0
      %1640 = vmatpush1.bf16.msra.mxu0 0
      %1641 = vmatprep.mubr.bf16.mxu0 0
      %1642 = vmatmul.mubr.bf16.gmra.mrb[0].mxu0 %v1607
      %v1643 = vpop.f32.mrb[0].mxu0
      %v1644 = vadd.f32 %v1592, %v1643
      %v1645 = vpop.f32.mrb[0].mxu0
      %v1646 = vpop.f32.mrb[0].mxu0
      %v1647 = vpop.f32.mrb[0].mxu0
      %1648 = vdwg.mxu0
      %v1649 = vmul.f32 %v1644, 0.5
      %v1650 = vmul.f32 %v1644, %v1644
      %v1651 = vmul.f32 %v1650, %v1644
      %v1652 = vmul.f32 %v1651, 0.044715
      %v1653 = vadd.f32 %v1644, %v1652
      %v1654 = vmul.f32 %v1653, 0.7978846
      %v1655 = vtanh.pop %v1654
      %v1656 = vadd.f32 %v1655, 1.0
      %v1657 = vmul.f32 %v1649, %v1656
      %v1658 = vpack.c.bf16 %v1657, %v1657
      %v1659 = vld [vmem:[%s10] sm:$0xf]
      %v1660 = vld [vmem:[%s10 + $0x4] sm:$0xf]
      %v1661 = vld [vmem:[%s10 + $0x8] sm:$0xf]
      %v1662 = vld [vmem:[%s10 + $0xc] sm:$0xf]
      %v1663 = vld [vmem:[%s10 + $0x10] sm:$0xf]
      %v1664 = vld [vmem:[%s10 + $0x14] sm:$0xf]
      %v1665 = vld [vmem:[%s10 + $0x18] sm:$0xf]
      %v1666 = vld [vmem:[%s10 + $0x1c] sm:$0xf]
      %v1667 = vld [vmem:[%s10 + $0x20] sm:$0xf]
      %v1668 = vld [vmem:[%s10 + $0x24] sm:$0xf]
      %v1669 = vld [vmem:[%s10 + $0x28] sm:$0xf]
      %v1670 = vld [vmem:[%s10 + $0x2c] sm:$0xf]
      %v1671 = vld [vmem:[%s10 + $0x30] sm:$0xf]
      %v1672 = vld [vmem:[%s10 + $0x34] sm:$0xf]
      %v1673 = vld [vmem:[%s10 + $0x38] sm:$0xf]
      %v1674 = vld [vmem:[%s10 + $0x3c] sm:$0xf]
      %v1691 = vunpack.c.l.b16 %v1659
      %v1692 = vunpack.c.l.b16 %v1660
      %v1693 = vunpack.c.l.b16 %v1661
      %v1694 = vunpack.c.l.b16 %v1662
      %v1695 = vunpack.c.l.b16 %v1663
      %v1696 = vunpack.c.l.b16 %v1664
      %v1697 = vunpack.c.l.b16 %v1665
      %v1698 = vunpack.c.l.b16 %v1666
      %v1699 = vunpack.c.l.b16 %v1667
      %v1700 = vunpack.c.l.b16 %v1668
      %v1701 = vunpack.c.l.b16 %v1669
      %v1702 = vunpack.c.l.b16 %v1670
      %v1703 = vunpack.c.l.b16 %v1671
      %v1704 = vunpack.c.l.b16 %v1672
      %v1705 = vunpack.c.l.b16 %v1673
      %v1706 = vunpack.c.l.b16 %v1674
      %v1707 = vpack.c.b16 %v1692, %v1691
      %v1708 = vpack.c.b16 %v1694, %v1693
      %v1709 = vpack.c.b16 %v1696, %v1695
      %v1710 = vpack.c.b16 %v1698, %v1697
      %v1711 = vpack.c.b16 %v1700, %v1699
      %v1712 = vpack.c.b16 %v1702, %v1701
      %v1713 = vpack.c.b16 %v1704, %v1703
      %v1714 = vpack.c.b16 %v1706, %v1705
      %1723 = vmatprep.subr.bf16.mxu0 0
      %1724 = vmatpush1.bf16.msra.mxu0 %v1707
      %1725 = vmatprep.subr.bf16.mxu0 0
      %1726 = vmatpush1.bf16.msra.mxu0 %v1708
      %1727 = vmatprep.subr.bf16.mxu0 0
      %1728 = vmatpush1.bf16.msra.mxu0 %v1709
      %1729 = vmatprep.subr.bf16.mxu0 0
      %1730 = vmatpush1.bf16.msra.mxu0 %v1710
      %1731 = vmatprep.subr.bf16.mxu0 0
      %1732 = vmatpush1.bf16.msra.mxu0 %v1711
      %1733 = vmatprep.subr.bf16.mxu0 0
      %1734 = vmatpush1.bf16.msra.mxu0 %v1712
      %1735 = vmatprep.subr.bf16.mxu0 0
      %1736 = vmatpush1.bf16.msra.mxu0 %v1713
      %1737 = vmatprep.subr.bf16.mxu0 0
      %1738 = vmatpush1.bf16.msra.mxu0 %v1714
      %1739 = vmatprep.subr.bf16.mxu0 0
      %1740 = vmatpush1.bf16.msra.mxu0 0
      %1741 = vmatprep.subr.bf16.mxu0 0
      %1742 = vmatpush1.bf16.msra.mxu0 0
      %1743 = vmatprep.subr.bf16.mxu0 0
      %1744 = vmatpush1.bf16.msra.mxu0 0
      %1745 = vmatprep.subr.bf16.mxu0 0
      %1746 = vmatpush1.bf16.msra.mxu0 0
      %1747 = vmatprep.subr.bf16.mxu0 0
      %1748 = vmatpush1.bf16.msra.mxu0 0
      %1749 = vmatprep.subr.bf16.mxu0 0
      %1750 = vmatpush1.bf16.msra.mxu0 0
      %1751 = vmatprep.subr.bf16.mxu0 0
      %1752 = vmatpush1.bf16.msra.mxu0 0
      %1753 = vmatprep.subr.bf16.mxu0 0
      %1754 = vmatpush1.bf16.msra.mxu0 0
      %1755 = vmatprep.mubr.bf16.mxu0 0
      %1756 = vmatmul.mubr.bf16.gmra.mrb[0].mxu0 %v1658
      %v1757 = vpop.f32.mrb[0].mxu0
      %v1758 = vadd.f32 0.0, %v1757
      %v1759 = vpop.f32.mrb[0].mxu0
      %v1760 = vpop.f32.mrb[0].mxu0
      %v1761 = vpop.f32.mrb[0].mxu0
      %1762 = vdwg.mxu0
      %v1763 = vadd.f32 %v1552, %v1758
      %v1764 = vld [vmem:[%s11] sm:$0x1]
      %v1766 = vlaneseq
      %v1767 = vshrl.u32 %v1766, 7
      %v1768 = vsub.s32 0, %v1767
      %v1769 = vrot.slane %v1764, %v1768
      %v1771 = vadd.f32 %v1763, %v1769
      %1772 = vst.msk [vmem:[%s408] sm:$0xff] %vm413, %v1771
      %p1773 = scmp.lt.s32.totalorder %s23, 1
      %s1774 = scalar_select %p1773, %s23, 1
      %s1775 = smul.addr %s1774, 8
      %s1776 = scalar_lea.vmem %s12, %s1775
      // Predicated region
      $region69: #{vit_block.1} parent=67 // pred_check
        %p1777 = pneg %p298
      $region70: #{vit_block.1} parent=67 // pred_check_branch
        %1779 = sbr.rel (%p1777) target = $region72
      $region71: #{vit_block.1} parent=67 // pred_region
        _
      $region72: #{vit_block.1} parent=67 // pred_fallthru
        _
    $region68: #{vit_block.1} parent=5 // pred_fallthru
      _
    %p1780 = scmp.le.s32.totalorder 2, %s18
    // Predicated region
    $region73: #{vit_block.1} parent=5 // pred_check
      %p1781 = pneg %p1780
    $region74: #{vit_block.1} parent=5 // pred_check_branch
      %1783 = sbr.rel (%p1781) target = $region76
    $region75: #{vit_block.1} parent=5 // pred_region
      %s1784 = ssub.s32 %s18, 2
      // Predicated region
      $region77: #{vit_block.1} parent=75 // pred_check
        %p1785 = pneg %p304
      $region78: #{vit_block.1} parent=75 // pred_check_branch
        %1787 = sbr.rel (%p1785) target = $region80
      $region79: #{vit_block.1} parent=75 // pred_region
        %p1788 = scmp.lt.s32.totalorder %s24, 1
        %s1789 = scalar_select %p1788, %s24, 1
        %s1790 = smul.addr %s1789, 8
        %s1791 = scalar_lea.vmem %s12, %s1790
      $region80: #{vit_block.1} parent=75 // pred_fallthru
        _
    $region76: #{vit_block.1} parent=5 // pred_fallthru
      _
  $region6: #{vit_block.1} parent=0 // loop_footer
    %s22 = sadd.s32 1, %s18
  $region7: #{vit_block.1} parent=0 // loop_footer_branch
    %17 = sbr.rel target = $region3
  $region8: #{vit_block.1} parent=0 // loop_exit
    _

</llo_original>
